<compile_context>
chip_gen: v6e
topology: v6e:2x2x1
jax: 0.10.0
libtpu: 0.0.40
codegen_flags: <defaults>
</compile_context>

<pallas_src>
import math
import functools

import jax
import jax.numpy as jnp
from jax import lax
from jax.experimental import pallas as pl
from jax.experimental.pallas import tpu as pltpu


def _mha_kernel(q_ref, k_ref, v_ref,
                wq_ref, wk_ref, wv_ref, wo_ref,
                bq_ref, bk_ref, bv_ref, bo_ref,
                o_ref, kp_ref, vp_ref, *, nhead, head_dim):
    """One (batch b, query-tile i) grid step.

    q_ref: (TQ, D) query tile.  k_ref/v_ref: (Lk, D) key/value for batch b.
    w*_ref: (D, D) pre-transposed weights (projection is a plain x @ W_t).
    b*_ref: (1, D) biases.  kp_ref/vp_ref: (Lk, D) VMEM scratch caching the projected
    K/V for the whole batch element (filled once when program_id(1) == 0).
    """
    cdt = q_ref.dtype                       # MXU operand dtype (bf16 in prod)
    scale = 1.0 / math.sqrt(head_dim)

    # --- K/V projections: once per batch element, reused for all query tiles. ---
    @pl.when(pl.program_id(1) == 0)
    def _():
        kp = jnp.dot(k_ref[...], wk_ref[...],
                     preferred_element_type=jnp.float32) + bk_ref[...]
        vp = jnp.dot(v_ref[...], wv_ref[...],
                     preferred_element_type=jnp.float32) + bv_ref[...]
        kp_ref[...] = kp.astype(cdt)
        vp_ref[...] = vp.astype(cdt)

    # --- Q projection for this tile; fold the attention scale into Q once. ---
    qp = jnp.dot(q_ref[...], wq_ref[...], preferred_element_type=jnp.float32)
    qp = ((qp + bq_ref[...]) * scale).astype(cdt)                  # (TQ, D)

    kp = kp_ref[...]                                               # (Lk, D) cached
    vp = vp_ref[...]

    # --- Per-head attention: S / softmax stats in f32, MXU operands in cdt. ---
    ctx_heads = []
    for h in range(nhead):
        lo = h * head_dim
        hi = lo + head_dim
        qh = qp[:, lo:hi]                                          # (TQ, hd)
        kh = kp[:, lo:hi]                                          # (Lk, hd)
        vh = vp[:, lo:hi]                                          # (Lk, hd)
        s = lax.dot_general(qh, kh, (((1,), (1,)), ((), ())),
                            preferred_element_type=jnp.float32)    # (TQ, Lk) = Q K^T
        m = jnp.max(s, axis=-1, keepdims=True)
        p = jnp.exp(s - m)                                         # unnormalized probs
        # Deferred normalization: scale the (TQ, hd) context, not the (TQ, Lk) slab.
        # Row sum >= 1 (exp(0) term), so the approx EUP reciprocal is safe.
        inv = pl.reciprocal(jnp.sum(p, axis=-1, keepdims=True), approx=True)
        acc = jnp.dot(p.astype(cdt), vh, preferred_element_type=jnp.float32)
        ctx_heads.append(acc * inv)                                # (TQ, hd) f32
    ctx = jnp.concatenate(ctx_heads, axis=-1).astype(cdt)          # (TQ, D)

    # --- Output projection. ---
    out = jnp.dot(ctx, wo_ref[...], preferred_element_type=jnp.float32) + bo_ref[...]
    o_ref[...] = out.astype(o_ref.dtype)


def cross_attention_pallas(query, key, value, params, nhead, *,
                           tq=256,                      # v6e/v7x default; use 128 on v5e
                           single_buffer_residents=False,  # set True on v7x (64 MiB VMEM)
                           vmem_limit_bytes=64 * 1024 * 1024):
    """query: (B, Lq, D), key/value: (B, Lk, D). Returns (B, Lq, D)."""
    B, Lq, D = query.shape
    _, Lk, _ = key.shape
    assert D % nhead == 0
    head_dim = D // nhead
    TQ = min(tq, Lq)

    in_w = params["in_proj_weight"]        # (3D, D), PyTorch layout (out, in)
    in_b = params["in_proj_bias"]          # (3D,)
    wo = params["out_proj_weight"]         # (D, D)
    bo = params["out_proj_bias"]           # (D,)

    # Pre-transpose ONCE in the wrapper so all in-kernel projections are plain x @ W_t.
    wq_t = in_w[:D].T                      # (D, D)
    wk_t = in_w[D:2 * D].T
    wv_t = in_w[2 * D:].T
    wo_t = wo.T
    bq = in_b[:D].reshape(1, D)
    bk = in_b[D:2 * D].reshape(1, D)
    bv = in_b[2 * D:].reshape(1, D)
    bo2 = bo.reshape(1, D)

    kernel = functools.partial(_mha_kernel, nhead=nhead, head_dim=head_dim)

    # Resident (constant index_map) operands: weights & biases are DMA'd once per call.
    resident_kw = {}
    if single_buffer_residents:
        resident_kw = dict(pipeline_mode=pl.Buffered(1))   # v7x: halve their VMEM footprint

    q_spec = pl.BlockSpec((pl.Squeezed(), TQ, D), lambda b, i: (b, i, 0))
    kv_spec = pl.BlockSpec((pl.Squeezed(), Lk, D), lambda b, i: (b, 0, 0))
    w_spec = pl.BlockSpec((D, D), lambda b, i: (0, 0), **resident_kw)
    b_spec = pl.BlockSpec((1, D), lambda b, i: (0, 0), **resident_kw)
    out_spec = pl.BlockSpec((pl.Squeezed(), TQ, D), lambda b, i: (b, i, 0))

    return pl.pallas_call(
        kernel,
        out_shape=jax.ShapeDtypeStruct((B, Lq, D), query.dtype),
        grid_spec=pltpu.PrefetchScalarGridSpec(
            num_scalar_prefetch=0,
            # Axis 0 (batch) is parallel (megacore); axis 1 (query tiles) is arbitrary so the
            # per-batch K/V projection cached in scratch is reused across all TQ tiles.
            grid=(B, pl.cdiv(Lq, TQ)),
            in_specs=[q_spec, kv_spec, kv_spec,
                      w_spec, w_spec, w_spec, w_spec,
                      b_spec, b_spec, b_spec, b_spec],
            out_specs=out_spec,
            scratch_shapes=[pltpu.VMEM((Lk, D), query.dtype),   # cached projected K
                            pltpu.VMEM((Lk, D), query.dtype)],  # cached projected V
        ),
        compiler_params=pltpu.CompilerParams(
            dimension_semantics=("parallel", "arbitrary"),
            vmem_limit_bytes=vmem_limit_bytes),
    )(query, key, value, wq_t, wk_t, wv_t, wo_t, bq, bk, bv, bo2)


def cross_attention_reference(query, key, value, params, nhead):
    """Pure-JAX f32 reference matching torch.nn.MultiheadAttention forward (no masks)."""
    B, Lq, D = query.shape
    Lk = key.shape[1]
    hd = D // nhead
    in_w, in_b = params["in_proj_weight"], params["in_proj_bias"]
    wq, wk, wv = in_w[:D], in_w[D:2 * D], in_w[2 * D:]
    bq, bk, bv = in_b[:D], in_b[D:2 * D], in_b[2 * D:]

    qp = query @ wq.T + bq
    kp = key @ wk.T + bk
    vp = value @ wv.T + bv

    qh = qp.reshape(B, Lq, nhead, hd).transpose(0, 2, 1, 3)
    kh = kp.reshape(B, Lk, nhead, hd).transpose(0, 2, 1, 3)
    vh = vp.reshape(B, Lk, nhead, hd).transpose(0, 2, 1, 3)

    s = jnp.einsum("bhqd,bhkd->bhqk", qh, kh) / math.sqrt(hd)
    p = jax.nn.softmax(s, axis=-1)
    ctx = jnp.einsum("bhqk,bhkd->bhqd", p, vh)
    ctx = ctx.transpose(0, 2, 1, 3).reshape(B, Lq, D)
    return ctx @ params["out_proj_weight"].T + params["out_proj_bias"]


def init_params(key, d_model):
    """Deterministic init mirroring nn.MultiheadAttention parameter shapes."""
    k1, k2, k3, k4 = jax.random.split(key, 4)
    bound = 1.0 / math.sqrt(d_model)
    in_proj_weight = jax.random.uniform(k1, (3 * d_model, d_model),
                                        minval=-bound, maxval=bound, dtype=jnp.float32)
    out_proj_weight = jax.random.uniform(k2, (d_model, d_model),
                                         minval=-bound, maxval=bound, dtype=jnp.float32)
    # Non-zero biases so the bias path of the kernel is actually exercised.
    in_proj_bias = jax.random.uniform(k3, (3 * d_model,),
                                      minval=-0.1, maxval=0.1, dtype=jnp.float32)
    out_proj_bias = jax.random.uniform(k4, (d_model,),
                                       minval=-0.1, maxval=0.1, dtype=jnp.float32)
    return {
        "in_proj_weight": in_proj_weight,
        "in_proj_bias": in_proj_bias,
        "out_proj_weight": out_proj_weight,
        "out_proj_bias": out_proj_bias,
    }


if __name__ == "__main__":
    B, Lq, Lk, D, NHEAD = 2, 8, 8, 32, 4

    root = jax.random.PRNGKey(0)
    kq, kk, kv, kp = jax.random.split(root, 4)
    query = jax.random.normal(kq, (B, Lq, D), dtype=jnp.float32)
    key_in = jax.random.normal(kk, (B, Lk, D), dtype=jnp.float32)
    value = jax.random.normal(kv, (B, Lk, D), dtype=jnp.float32)
    params = init_params(kp, D)

    # ---- f32 run (approx EUP reciprocal is the only source of deviation) ----
    out = cross_attention_pallas(query, key_in, value, params, NHEAD)
    out = jax.block_until_ready(out)
    ref = cross_attention_reference(query, key_in, value, params, NHEAD)
    assert out.shape == (B, Lq, D)
    assert jnp.allclose(out, ref, atol=2e-2, rtol=2e-2), "f32 mismatch vs reference"

    # ---- bf16 run (MXU-friendly operand path; looser tolerance expected) ----
    to_bf16 = lambda t: t.astype(jnp.bfloat16)
    q_bf, k_bf, v_bf = to_bf16(query), to_bf16(key_in), to_bf16(value)
    params_bf = jax.tree_util.tree_map(to_bf16, params)
    out_bf = cross_attention_pallas(q_bf, k_bf, v_bf, params_bf, NHEAD)
    out_bf = jax.block_until_ready(out_bf)
    params_up = jax.tree_util.tree_map(lambda t: t.astype(jnp.float32), params_bf)
    ref_bf = cross_attention_reference(q_bf.astype(jnp.float32),
                                       k_bf.astype(jnp.float32),
                                       v_bf.astype(jnp.float32),
                                       params_up, NHEAD)
    assert out_bf.shape == (B, Lq, D)
    assert jnp.allclose(out_bf.astype(jnp.float32), ref_bf, atol=1e-1, rtol=1e-1), \
        "bf16 mismatch vs reference"

    print("KERNEL_OK")
</pallas_src>

<mosaic_0001>
module attributes {stable_mosaic.version = 11 : i64} {
  func.func @_mha_kernel(%arg0: i32, %arg1: i32, %arg2: memref<1x8x32xf32, #tpu.memory_space<vmem>>, %arg3: memref<1x8x32xf32, #tpu.memory_space<vmem>>, %arg4: memref<1x8x32xf32, #tpu.memory_space<vmem>>, %arg5: memref<32x32xf32, #tpu.memory_space<vmem>>, %arg6: memref<32x32xf32, #tpu.memory_space<vmem>>, %arg7: memref<32x32xf32, #tpu.memory_space<vmem>>, %arg8: memref<32x32xf32, #tpu.memory_space<vmem>>, %arg9: memref<1x32xf32, #tpu.memory_space<vmem>>, %arg10: memref<1x32xf32, #tpu.memory_space<vmem>>, %arg11: memref<1x32xf32, #tpu.memory_space<vmem>>, %arg12: memref<1x32xf32, #tpu.memory_space<vmem>>, %arg13: memref<1x8x32xf32, #tpu.memory_space<vmem>>, %arg14: memref<8x32xf32, #tpu.memory_space<vmem>>, %arg15: memref<8x32xf32, #tpu.memory_space<vmem>>) attributes {dimension_semantics = [#tpu.dimension_semantics<parallel>, #tpu.dimension_semantics<arbitrary>], iteration_bounds = array<i64: 2, 1>, scalar_prefetch = 0 : i64, scratch_operands = 2 : i64, tpu.core_type = #tpu.core_type<tc>, window_params = [{transform_indices = @transform_0, window_bounds = array<i64: 1, 8, 32>}, {transform_indices = @transform_1, window_bounds = array<i64: 1, 8, 32>}, {transform_indices = @transform_2, window_bounds = array<i64: 1, 8, 32>}, {pipeline_mode = #tpu.pipeline_mode<synchronous>, transform_indices = @transform_3, window_bounds = array<i64: 32, 32>}, {pipeline_mode = #tpu.pipeline_mode<synchronous>, transform_indices = @transform_4, window_bounds = array<i64: 32, 32>}, {pipeline_mode = #tpu.pipeline_mode<synchronous>, transform_indices = @transform_5, window_bounds = array<i64: 32, 32>}, {pipeline_mode = #tpu.pipeline_mode<synchronous>, transform_indices = @transform_6, window_bounds = array<i64: 32, 32>}, {pipeline_mode = #tpu.pipeline_mode<synchronous>, transform_indices = @transform_7, window_bounds = array<i64: 1, 32>}, {pipeline_mode = #tpu.pipeline_mode<synchronous>, transform_indices = @transform_8, window_bounds = array<i64: 1, 32>}, {pipeline_mode = #tpu.pipeline_mode<synchronous>, transform_indices = @transform_9, window_bounds = array<i64: 1, 32>}, {pipeline_mode = #tpu.pipeline_mode<synchronous>, transform_indices = @transform_10, window_bounds = array<i64: 1, 32>}, {transform_indices = @transform_11, window_bounds = array<i64: 1, 8, 32>}]} {
    %c0_i32 = arith.constant 0 : i32
    %0 = arith.cmpi eq, %arg1, %c0_i32 : i32
    %1 = arith.extui %0 : i1 to i32
    %c0_i32_0 = arith.constant 0 : i32
    %2 = arith.cmpi ne, %1, %c0_i32_0 : i32
    scf.if %2 {
      %c0_36 = arith.constant 0 : index
      %c0_37 = arith.constant 0 : index
      %c0_38 = arith.constant 0 : index
      %83 = vector.load %arg3[%c0_36, %c0_37, %c0_38] : memref<1x8x32xf32, #tpu.memory_space<vmem>>, vector<1x8x32xf32>
      %84 = vector.shape_cast %83 : vector<1x8x32xf32> to vector<8x32xf32>
      %c0_39 = arith.constant 0 : index
      %c0_40 = arith.constant 0 : index
      %85 = vector.load %arg6[%c0_39, %c0_40] : memref<32x32xf32, #tpu.memory_space<vmem>>, vector<32x32xf32>
      %cst_41 = arith.constant dense<0.000000e+00> : vector<8x32xf32>
      %86 = tpu.matmul %84, %85, %cst_41 {dimension_numbers = #tpu.dot_dimension_numbers<[1], [0], [0], [1], [0, 0, 1, 1], [], []>} : vector<8x32xf32>, vector<32x32xf32>, vector<8x32xf32> -> vector<8x32xf32>
      %c0_42 = arith.constant 0 : index
      %c0_43 = arith.constant 0 : index
      %87 = vector.load %arg10[%c0_42, %c0_43] : memref<1x32xf32, #tpu.memory_space<vmem>>, vector<1x32xf32>
      %88 = vector.broadcast %87 : vector<1x32xf32> to vector<8x32xf32>
      %89 = arith.addf %86, %88 : vector<8x32xf32>
      %c0_44 = arith.constant 0 : index
      %c0_45 = arith.constant 0 : index
      %c0_46 = arith.constant 0 : index
      %90 = vector.load %arg4[%c0_44, %c0_45, %c0_46] : memref<1x8x32xf32, #tpu.memory_space<vmem>>, vector<1x8x32xf32>
      %91 = vector.shape_cast %90 : vector<1x8x32xf32> to vector<8x32xf32>
      %c0_47 = arith.constant 0 : index
      %c0_48 = arith.constant 0 : index
      %92 = vector.load %arg7[%c0_47, %c0_48] : memref<32x32xf32, #tpu.memory_space<vmem>>, vector<32x32xf32>
      %cst_49 = arith.constant dense<0.000000e+00> : vector<8x32xf32>
      %93 = tpu.matmul %91, %92, %cst_49 {dimension_numbers = #tpu.dot_dimension_numbers<[1], [0], [0], [1], [0, 0, 1, 1], [], []>} : vector<8x32xf32>, vector<32x32xf32>, vector<8x32xf32> -> vector<8x32xf32>
      %c0_50 = arith.constant 0 : index
      %c0_51 = arith.constant 0 : index
      %94 = vector.load %arg11[%c0_50, %c0_51] : memref<1x32xf32, #tpu.memory_space<vmem>>, vector<1x32xf32>
      %95 = vector.broadcast %94 : vector<1x32xf32> to vector<8x32xf32>
      %96 = arith.addf %93, %95 : vector<8x32xf32>
      %c0_52 = arith.constant 0 : index
      %c0_53 = arith.constant 0 : index
      %97 = vector.load %arg14[%c0_52, %c0_53] : memref<8x32xf32, #tpu.memory_space<vmem>>, vector<8x32xf32>
      tpu.vector_store %arg14[%c0_52, %c0_53], %89 {strides = array<i32>} : memref<8x32xf32, #tpu.memory_space<vmem>>, vector<8x32xf32>,
      %c0_54 = arith.constant 0 : index
      %c0_55 = arith.constant 0 : index
      %98 = vector.load %arg15[%c0_54, %c0_55] : memref<8x32xf32, #tpu.memory_space<vmem>>, vector<8x32xf32>
      tpu.vector_store %arg15[%c0_54, %c0_55], %96 {strides = array<i32>} : memref<8x32xf32, #tpu.memory_space<vmem>>, vector<8x32xf32>,
    } else {
    }
    %c0 = arith.constant 0 : index
    %c0_1 = arith.constant 0 : index
    %c0_2 = arith.constant 0 : index
    %3 = vector.load %arg2[%c0, %c0_1, %c0_2] : memref<1x8x32xf32, #tpu.memory_space<vmem>>, vector<1x8x32xf32>
    %4 = vector.shape_cast %3 : vector<1x8x32xf32> to vector<8x32xf32>
    %c0_3 = arith.constant 0 : index
    %c0_4 = arith.constant 0 : index
    %5 = vector.load %arg5[%c0_3, %c0_4] : memref<32x32xf32, #tpu.memory_space<vmem>>, vector<32x32xf32>
    %cst = arith.constant dense<0.000000e+00> : vector<8x32xf32>
    %6 = tpu.matmul %4, %5, %cst {dimension_numbers = #tpu.dot_dimension_numbers<[1], [0], [0], [1], [0, 0, 1, 1], [], []>} : vector<8x32xf32>, vector<32x32xf32>, vector<8x32xf32> -> vector<8x32xf32>
    %c0_5 = arith.constant 0 : index
    %c0_6 = arith.constant 0 : index
    %7 = vector.load %arg9[%c0_5, %c0_6] : memref<1x32xf32, #tpu.memory_space<vmem>>, vector<1x32xf32>
    %8 = vector.broadcast %7 : vector<1x32xf32> to vector<8x32xf32>
    %9 = arith.addf %6, %8 : vector<8x32xf32>
    %cst_7 = arith.constant 0.353553385 : f32
    %10 = vector.broadcast %cst_7 : f32 to vector<8x32xf32>
    %11 = arith.mulf %9, %10 : vector<8x32xf32>
    %c0_8 = arith.constant 0 : index
    %c0_9 = arith.constant 0 : index
    %12 = vector.load %arg14[%c0_8, %c0_9] : memref<8x32xf32, #tpu.memory_space<vmem>>, vector<8x32xf32>
    %c0_10 = arith.constant 0 : index
    %c0_11 = arith.constant 0 : index
    %13 = vector.load %arg15[%c0_10, %c0_11] : memref<8x32xf32, #tpu.memory_space<vmem>>, vector<8x32xf32>
    %14 = vector.extract_strided_slice %11 {offsets = [0, 0], sizes = [8, 8], strides = [1, 1]} : vector<8x32xf32> to vector<8x8xf32>
    %15 = vector.extract_strided_slice %12 {offsets = [0, 0], sizes = [8, 8], strides = [1, 1]} : vector<8x32xf32> to vector<8x8xf32>
    %16 = vector.extract_strided_slice %13 {offsets = [0, 0], sizes = [8, 8], strides = [1, 1]} : vector<8x32xf32> to vector<8x8xf32>
    %cst_12 = arith.constant dense<0.000000e+00> : vector<8x8xf32>
    %17 = tpu.matmul %14, %15, %cst_12 {dimension_numbers = #tpu.dot_dimension_numbers<[1], [1], [0], [0], [0, 0, 1, 0], [], []>} : vector<8x8xf32>, vector<8x8xf32>, vector<8x8xf32> -> vector<8x8xf32>
    %cst_13 = arith.constant dense<0xFF800000> : vector<8xf32>
    %18 = vector.multi_reduction <maximumf>, %17, %cst_13 [1] : vector<8x8xf32> to vector<8xf32>
    %19 = vector.shape_cast %18 : vector<8xf32> to vector<8x1xf32>
    %20 = vector.broadcast %19 : vector<8x1xf32> to vector<8x8xf32>
    %21 = arith.subf %17, %20 : vector<8x8xf32>
    %22 = math.exp %21 : vector<8x8xf32>
    %cst_14 = arith.constant dense<0.000000e+00> : vector<8xf32>
    %23 = vector.multi_reduction <add>, %22, %cst_14 [1] : vector<8x8xf32> to vector<8xf32>
    %24 = vector.shape_cast %23 : vector<8xf32> to vector<8x1xf32>
    %25 = tpu.reciprocal %24 {approx = true} : vector<8x1xf32> -> vector<8x1xf32>
    %cst_15 = arith.constant dense<0.000000e+00> : vector<8x8xf32>
    %26 = tpu.matmul %22, %16, %cst_15 {dimension_numbers = #tpu.dot_dimension_numbers<[1], [0], [0], [1], [0, 0, 1, 1], [], []>} : vector<8x8xf32>, vector<8x8xf32>, vector<8x8xf32> -> vector<8x8xf32>
    %27 = vector.broadcast %25 : vector<8x1xf32> to vector<8x8xf32>
    %28 = arith.mulf %26, %27 : vector<8x8xf32>
    %29 = vector.extract_strided_slice %11 {offsets = [0, 8], sizes = [8, 8], strides = [1, 1]} : vector<8x32xf32> to vector<8x8xf32>
    %30 = vector.extract_strided_slice %12 {offsets = [0, 8], sizes = [8, 8], strides = [1, 1]} : vector<8x32xf32> to vector<8x8xf32>
    %31 = vector.extract_strided_slice %13 {offsets = [0, 8], sizes = [8, 8], strides = [1, 1]} : vector<8x32xf32> to vector<8x8xf32>
    %cst_16 = arith.constant dense<0.000000e+00> : vector<8x8xf32>
    %32 = tpu.matmul %29, %30, %cst_16 {dimension_numbers = #tpu.dot_dimension_numbers<[1], [1], [0], [0], [0, 0, 1, 0], [], []>} : vector<8x8xf32>, vector<8x8xf32>, vector<8x8xf32> -> vector<8x8xf32>
    %cst_17 = arith.constant dense<0xFF800000> : vector<8xf32>
    %33 = vector.multi_reduction <maximumf>, %32, %cst_17 [1] : vector<8x8xf32> to vector<8xf32>
    %34 = vector.shape_cast %33 : vector<8xf32> to vector<8x1xf32>
    %35 = vector.broadcast %34 : vector<8x1xf32> to vector<8x8xf32>
    %36 = arith.subf %32, %35 : vector<8x8xf32>
    %37 = math.exp %36 : vector<8x8xf32>
    %cst_18 = arith.constant dense<0.000000e+00> : vector<8xf32>
    %38 = vector.multi_reduction <add>, %37, %cst_18 [1] : vector<8x8xf32> to vector<8xf32>
    %39 = vector.shape_cast %38 : vector<8xf32> to vector<8x1xf32>
    %40 = tpu.reciprocal %39 {approx = true} : vector<8x1xf32> -> vector<8x1xf32>
    %cst_19 = arith.constant dense<0.000000e+00> : vector<8x8xf32>
    %41 = tpu.matmul %37, %31, %cst_19 {dimension_numbers = #tpu.dot_dimension_numbers<[1], [0], [0], [1], [0, 0, 1, 1], [], []>} : vector<8x8xf32>, vector<8x8xf32>, vector<8x8xf32> -> vector<8x8xf32>
    %42 = vector.broadcast %40 : vector<8x1xf32> to vector<8x8xf32>
    %43 = arith.mulf %41, %42 : vector<8x8xf32>
    %44 = vector.extract_strided_slice %11 {offsets = [0, 16], sizes = [8, 8], strides = [1, 1]} : vector<8x32xf32> to vector<8x8xf32>
    %45 = vector.extract_strided_slice %12 {offsets = [0, 16], sizes = [8, 8], strides = [1, 1]} : vector<8x32xf32> to vector<8x8xf32>
    %46 = vector.extract_strided_slice %13 {offsets = [0, 16], sizes = [8, 8], strides = [1, 1]} : vector<8x32xf32> to vector<8x8xf32>
    %cst_20 = arith.constant dense<0.000000e+00> : vector<8x8xf32>
    %47 = tpu.matmul %44, %45, %cst_20 {dimension_numbers = #tpu.dot_dimension_numbers<[1], [1], [0], [0], [0, 0, 1, 0], [], []>} : vector<8x8xf32>, vector<8x8xf32>, vector<8x8xf32> -> vector<8x8xf32>
    %cst_21 = arith.constant dense<0xFF800000> : vector<8xf32>
    %48 = vector.multi_reduction <maximumf>, %47, %cst_21 [1] : vector<8x8xf32> to vector<8xf32>
    %49 = vector.shape_cast %48 : vector<8xf32> to vector<8x1xf32>
    %50 = vector.broadcast %49 : vector<8x1xf32> to vector<8x8xf32>
    %51 = arith.subf %47, %50 : vector<8x8xf32>
    %52 = math.exp %51 : vector<8x8xf32>
    %cst_22 = arith.constant dense<0.000000e+00> : vector<8xf32>
    %53 = vector.multi_reduction <add>, %52, %cst_22 [1] : vector<8x8xf32> to vector<8xf32>
    %54 = vector.shape_cast %53 : vector<8xf32> to vector<8x1xf32>
    %55 = tpu.reciprocal %54 {approx = true} : vector<8x1xf32> -> vector<8x1xf32>
    %cst_23 = arith.constant dense<0.000000e+00> : vector<8x8xf32>
    %56 = tpu.matmul %52, %46, %cst_23 {dimension_numbers = #tpu.dot_dimension_numbers<[1], [0], [0], [1], [0, 0, 1, 1], [], []>} : vector<8x8xf32>, vector<8x8xf32>, vector<8x8xf32> -> vector<8x8xf32>
    %57 = vector.broadcast %55 : vector<8x1xf32> to vector<8x8xf32>
    %58 = arith.mulf %56, %57 : vector<8x8xf32>
    %59 = vector.extract_strided_slice %11 {offsets = [0, 24], sizes = [8, 8], strides = [1, 1]} : vector<8x32xf32> to vector<8x8xf32>
    %60 = vector.extract_strided_slice %12 {offsets = [0, 24], sizes = [8, 8], strides = [1, 1]} : vector<8x32xf32> to vector<8x8xf32>
    %61 = vector.extract_strided_slice %13 {offsets = [0, 24], sizes = [8, 8], strides = [1, 1]} : vector<8x32xf32> to vector<8x8xf32>
    %cst_24 = arith.constant dense<0.000000e+00> : vector<8x8xf32>
    %62 = tpu.matmul %59, %60, %cst_24 {dimension_numbers = #tpu.dot_dimension_numbers<[1], [1], [0], [0], [0, 0, 1, 0], [], []>} : vector<8x8xf32>, vector<8x8xf32>, vector<8x8xf32> -> vector<8x8xf32>
    %cst_25 = arith.constant dense<0xFF800000> : vector<8xf32>
    %63 = vector.multi_reduction <maximumf>, %62, %cst_25 [1] : vector<8x8xf32> to vector<8xf32>
    %64 = vector.shape_cast %63 : vector<8xf32> to vector<8x1xf32>
    %65 = vector.broadcast %64 : vector<8x1xf32> to vector<8x8xf32>
    %66 = arith.subf %62, %65 : vector<8x8xf32>
    %67 = math.exp %66 : vector<8x8xf32>
    %cst_26 = arith.constant dense<0.000000e+00> : vector<8xf32>
    %68 = vector.multi_reduction <add>, %67, %cst_26 [1] : vector<8x8xf32> to vector<8xf32>
    %69 = vector.shape_cast %68 : vector<8xf32> to vector<8x1xf32>
    %70 = tpu.reciprocal %69 {approx = true} : vector<8x1xf32> -> vector<8x1xf32>
    %cst_27 = arith.constant dense<0.000000e+00> : vector<8x8xf32>
    %71 = tpu.matmul %67, %61, %cst_27 {dimension_numbers = #tpu.dot_dimension_numbers<[1], [0], [0], [1], [0, 0, 1, 1], [], []>} : vector<8x8xf32>, vector<8x8xf32>, vector<8x8xf32> -> vector<8x8xf32>
    %72 = vector.broadcast %70 : vector<8x1xf32> to vector<8x8xf32>
    %73 = arith.mulf %71, %72 : vector<8x8xf32>
    %74 = tpu.concatenate %28, %43, %58, %73 in 1 : vector<8x8xf32>, vector<8x8xf32>, vector<8x8xf32>, vector<8x8xf32> -> vector<8x32xf32>
    %c0_28 = arith.constant 0 : index
    %c0_29 = arith.constant 0 : index
    %75 = vector.load %arg8[%c0_28, %c0_29] : memref<32x32xf32, #tpu.memory_space<vmem>>, vector<32x32xf32>
    %cst_30 = arith.constant dense<0.000000e+00> : vector<8x32xf32>
    %76 = tpu.matmul %74, %75, %cst_30 {dimension_numbers = #tpu.dot_dimension_numbers<[1], [0], [0], [1], [0, 0, 1, 1], [], []>} : vector<8x32xf32>, vector<32x32xf32>, vector<8x32xf32> -> vector<8x32xf32>
    %c0_31 = arith.constant 0 : index
    %c0_32 = arith.constant 0 : index
    %77 = vector.load %arg12[%c0_31, %c0_32] : memref<1x32xf32, #tpu.memory_space<vmem>>, vector<1x32xf32>
    %78 = vector.broadcast %77 : vector<1x32xf32> to vector<8x32xf32>
    %79 = arith.addf %76, %78 : vector<8x32xf32>
    %c0_33 = arith.constant 0 : index
    %c0_34 = arith.constant 0 : index
    %c0_35 = arith.constant 0 : index
    %80 = vector.load %arg13[%c0_33, %c0_34, %c0_35] : memref<1x8x32xf32, #tpu.memory_space<vmem>>, vector<1x8x32xf32>
    %81 = vector.shape_cast %80 : vector<1x8x32xf32> to vector<8x32xf32>
    %82 = vector.shape_cast %79 : vector<8x32xf32> to vector<1x8x32xf32>
    tpu.vector_store %arg13[%c0_33, %c0_34, %c0_35], %82 {strides = array<i32>} : memref<1x8x32xf32, #tpu.memory_space<vmem>>, vector<1x8x32xf32>,
    return
  }
  func.func @transform_0(%arg0: i32, %arg1: i32) -> (i32, i32, i32) {
    %c0_i32 = arith.constant 0 : i32
    %c0_i32_0 = arith.constant 0 : i32
    return %arg0, %arg1, %c0_i32 : i32, i32, i32
  }
  func.func @transform_1(%arg0: i32, %arg1: i32) -> (i32, i32, i32) {
    %c0_i32 = arith.constant 0 : i32
    %c0_i32_0 = arith.constant 0 : i32
    %c0_i32_1 = arith.constant 0 : i32
    return %arg0, %c0_i32, %c0_i32_0 : i32, i32, i32
  }
  func.func @transform_2(%arg0: i32, %arg1: i32) -> (i32, i32, i32) {
    %c0_i32 = arith.constant 0 : i32
    %c0_i32_0 = arith.constant 0 : i32
    %c0_i32_1 = arith.constant 0 : i32
    return %arg0, %c0_i32, %c0_i32_0 : i32, i32, i32
  }
  func.func @transform_3(%arg0: i32, %arg1: i32) -> (i32, i32) {
    %c0_i32 = arith.constant 0 : i32
    %c0_i32_0 = arith.constant 0 : i32
    %c0_i32_1 = arith.constant 0 : i32
    return %c0_i32, %c0_i32_0 : i32, i32
  }
  func.func @transform_4(%arg0: i32, %arg1: i32) -> (i32, i32) {
    %c0_i32 = arith.constant 0 : i32
    %c0_i32_0 = arith.constant 0 : i32
    %c0_i32_1 = arith.constant 0 : i32
    return %c0_i32, %c0_i32_0 : i32, i32
  }
  func.func @transform_5(%arg0: i32, %arg1: i32) -> (i32, i32) {
    %c0_i32 = arith.constant 0 : i32
    %c0_i32_0 = arith.constant 0 : i32
    %c0_i32_1 = arith.constant 0 : i32
    return %c0_i32, %c0_i32_0 : i32, i32
  }
  func.func @transform_6(%arg0: i32, %arg1: i32) -> (i32, i32) {
    %c0_i32 = arith.constant 0 : i32
    %c0_i32_0 = arith.constant 0 : i32
    %c0_i32_1 = arith.constant 0 : i32
    return %c0_i32, %c0_i32_0 : i32, i32
  }
  func.func @transform_7(%arg0: i32, %arg1: i32) -> (i32, i32) {
    %c0_i32 = arith.constant 0 : i32
    %c0_i32_0 = arith.constant 0 : i32
    %c0_i32_1 = arith.constant 0 : i32
    return %c0_i32, %c0_i32_0 : i32, i32
  }
  func.func @transform_8(%arg0: i32, %arg1: i32) -> (i32, i32) {
    %c0_i32 = arith.constant 0 : i32
    %c0_i32_0 = arith.constant 0 : i32
    %c0_i32_1 = arith.constant 0 : i32
    return %c0_i32, %c0_i32_0 : i32, i32
  }
  func.func @transform_9(%arg0: i32, %arg1: i32) -> (i32, i32) {
    %c0_i32 = arith.constant 0 : i32
    %c0_i32_0 = arith.constant 0 : i32
    %c0_i32_1 = arith.constant 0 : i32
    return %c0_i32, %c0_i32_0 : i32, i32
  }
  func.func @transform_10(%arg0: i32, %arg1: i32) -> (i32, i32) {
    %c0_i32 = arith.constant 0 : i32
    %c0_i32_0 = arith.constant 0 : i32
    %c0_i32_1 = arith.constant 0 : i32
    return %c0_i32, %c0_i32_0 : i32, i32
  }
  func.func @transform_11(%arg0: i32, %arg1: i32) -> (i32, i32, i32) {
    %c0_i32 = arith.constant 0 : i32
    %c0_i32_0 = arith.constant 0 : i32
    return %arg0, %arg1, %c0_i32 : i32, i32, i32
  }
}

</mosaic_0001>

<llo_original>
// kernel: tpu_custom_call.1
$region0: #{tpu_custom_call.1}
  #allocation0 [shape = 'u32[]', space=smem, size = 0x4, offset = 0x4, fixed_abs, tag = 'smem constant byte address 0x4 - core index']
  #allocation1 [shape = 'u32[144,128]{1,0:T(1,128)}', space=vmem, size = 0x12000, scoped, tag = 'internal scratch']
  #allocation2 [shape = 'f32[8,32]{1,0:T(8,128)}', space=vmem, size = 0x1000, scoped, tag = 'scratch operand']
  #allocation3 [shape = 'f32[8,32]{1,0:T(8,128)}', space=vmem, size = 0x1000, scoped, tag = 'scratch operand']
  %s0 = inlined_call_operand.hbm [shape: f32[2,8,32], index: 0, kind: input, shape index: {}]
  %s1 = inlined_call_operand.hbm [shape: f32[2,8,32], index: 1, kind: input, shape index: {}]
  %s2 = inlined_call_operand.hbm [shape: f32[2,8,32], index: 2, kind: input, shape index: {}]
  %s3 = inlined_call_operand.hbm [shape: f32[32,32], index: 3, kind: input, shape index: {}]
  %s4 = inlined_call_operand.hbm [shape: f32[32,32], index: 4, kind: input, shape index: {}]
  %s5 = inlined_call_operand.hbm [shape: f32[32,32], index: 5, kind: input, shape index: {}]
  %s6 = inlined_call_operand.hbm [shape: f32[32,32], index: 6, kind: input, shape index: {}]
  %s7 = inlined_call_operand.vmem [shape: f32[1,32], index: 7, kind: input, shape index: {}]
  %s8 = inlined_call_operand.vmem [shape: f32[1,32], index: 8, kind: input, shape index: {}]
  %s9 = inlined_call_operand.vmem [shape: f32[1,32], index: 9, kind: input, shape index: {}]
  %s10 = inlined_call_operand.vmem [shape: f32[1,32], index: 10, kind: input, shape index: {}]
  %s11 = inlined_call_operand.hbm [shape: f32[2,8,32], index: 11, kind: output, shape index: {}]
  %s12 = sld [smem:[#allocation0]]
  $region109: #{tpu_custom_call.1} parent=0
    _
  %s14 = ssub.s32 1, %s12
  %s15 = scalar_select 0, %s14, %s12
  $region1: #{tpu_custom_call.1} parent=0
    #allocation4 [shape = 'u8[8192]{0}', space=vmem, size = 0x2000, scoped, tag = 'input window, operand 0']
    #allocation5 [shape = 's32[2]{0}', space=sflag, size = 0x8, scoped, tag = 'scoped memory for tpu_custom_call.1']
    #allocation6 [shape = 's32[2]{0}', space=sflag, size = 0x8, scoped, tag = 'scoped memory for tpu_custom_call.1']
    #allocation7 [shape = 'u8[8192]{0}', space=vmem, size = 0x2000, scoped, tag = 'input window, operand 1']
    #allocation8 [shape = 's32[2]{0}', space=sflag, size = 0x8, scoped, tag = 'scoped memory for tpu_custom_call.1']
    #allocation9 [shape = 'u8[8192]{0}', space=vmem, size = 0x2000, scoped, tag = 'input window, operand 2']
    #allocation10 [shape = 'u8[16384]{0}', space=vmem, size = 0x4000, scoped, tag = 'input window, operand 3, single buffered']
    #allocation11 [shape = 's32[1]{0}', space=sflag, size = 0x4, scoped, tag = 'scoped memory for tpu_custom_call.1']
    #allocation12 [shape = 'u8[16384]{0}', space=vmem, size = 0x4000, scoped, tag = 'input window, operand 4, single buffered']
    #allocation13 [shape = 'u8[16384]{0}', space=vmem, size = 0x4000, scoped, tag = 'input window, operand 5, single buffered']
    #allocation14 [shape = 's32[1]{0}', space=sflag, size = 0x4, scoped, tag = 'scoped memory for tpu_custom_call.1']
    #allocation15 [shape = 'u8[16384]{0}', space=vmem, size = 0x4000, scoped, tag = 'input window, operand 6, single buffered']
    #allocation16 [shape = 'u8[8192]{0}', space=vmem, size = 0x2000, scoped, tag = 'output window, operand 0']
    %16 = vsyncpa [#allocation5], 0
    %s17 = scalar_lea.sflag [#allocation5], 1
    %18 = vsyncpa %s17, 0
    %19 = vsyncpa [#allocation8], 0
    %s20 = scalar_lea.sflag [#allocation8], 1
    %21 = vsyncpa %s20, 0
    %22 = vsyncpa [#allocation11], 0
    %23 = vsyncpa [#allocation14], 0
    %24 = vsyncpa [#allocation6], 0
    %s25 = scalar_lea.sflag [#allocation6], 1
    %26 = vsyncpa %s25, 0
    loop: start=0, step=1, limit=4
    $region2: #{tpu_custom_call.1} parent=1 // loop_pre_header
      _
    $region3: #{tpu_custom_call.1} parent=1 // loop_header
      %s28 = sphi 0, %s32
      %p29 = scmp.ge.s32.totalorder %s28, 4
      %s35 = sphi 0, %s47
      %s36 = sphi 0, %s43
      %s37 = sphi 0, %s35
      %s38 = sphi 0, %s36
      %s39 = sphi 0, %s37
      %s40 = sphi 0, %s38
      %s52 = sphi 0, %s54
      %s55 = sphi 0, %s52
      %s56 = sphi 0, %s55
      %s72 = sphi 0, %s56
      %s78 = sphi 0, %s80
      %s81 = sphi 0, %s78
      %s82 = sphi 0, %s81
      %s98 = sphi 0, %s82
      %s104 = sphi 0, %s106
      %s107 = sphi 0, %s104
      %s108 = sphi 0, %s107
      %s124 = sphi 0, %s108
      %s128 = sphi 0, %s128
      %s130 = sphi 0, %s128
      %s131 = sphi 0, %s130
      %s145 = sphi 0, %s131
      %s149 = sphi 0, %s149
      %s151 = sphi 0, %s149
      %s152 = sphi 0, %s151
      %s166 = sphi 0, %s152
      %s170 = sphi 0, %s170
      %s172 = sphi 0, %s170
      %s173 = sphi 0, %s172
      %s187 = sphi 0, %s173
      %s191 = sphi 0, %s191
      %s193 = sphi 0, %s191
      %s194 = sphi 0, %s193
      %s208 = sphi 0, %s194
      %s212 = sphi 0, %s212
      %s214 = sphi 0, %s212
      %s215 = sphi 0, %s214
      %s229 = sphi 0, %s215
      %s233 = sphi 0, %s233
      %s235 = sphi 0, %s233
      %s236 = sphi 0, %s235
      %s250 = sphi 0, %s236
      %s254 = sphi 0, %s254
      %s256 = sphi 0, %s254
      %s257 = sphi 0, %s256
      %s271 = sphi 0, %s257
      %s275 = sphi 0, %s275
      %s277 = sphi 0, %s275
      %s278 = sphi 0, %s277
      %s292 = sphi 0, %s278
      %s300 = sphi 0, %s302
      %s303 = sphi 0, %s300
      %s304 = sphi 0, %s303
      %s320 = sphi 0, %s304
    $region4: #{tpu_custom_call.1} parent=1 // loop_header_branch
      %31 = sbr.rel (%p29) target = $region8
    $region5: #{tpu_custom_call.1} parent=1 // loop_body
      %s33 = ssub.s32 %s28, 1
      %s34 = ssub.s32 %s28, 2
      %s41 = sadd.s32 1, %s36
      %p42 = scmp.ge.s32.totalorder %s41, 1
      %s43 = scalar_select %p42, 0, %s41
      %s44 = sadd.s32 1, %s35
      %s45 = scalar_select %p42, %s44, %s35
      %p46 = scmp.ge.s32.totalorder %s45, 2
      %s47 = scalar_select %p46, 0, %s45
      %s48 = ssub.s32 %s35, %s47
      %s49 = ssub.s32 %s36, %s43
      %s50 = sor.u32 %s48, %s49
      %p51 = scmp.eq.s32.totalorder %s50, 0
      %s53 = sadd.s32 %s52, 1
      %s54 = scalar_select %p51, %s52, %s53
      %p57 = pneg %p51
      %p58 = scmp.eq.s32.totalorder %s28, 1
      %p59 = por %p57, %p58
      %p60 = scmp.ne.s32.totalorder %s52, %s55
      %p61 = scmp.eq.s32.totalorder %s28, 0
      %p62 = por %p60, %p61
      %p63 = scmp.ne.s32.totalorder %s52, %s55
      %p64 = scmp.eq.s32.totalorder %s33, 1
      %p65 = por %p63, %p64
      %p66 = scmp.ne.s32.totalorder %s55, %s56
      %p67 = scmp.eq.s32.totalorder %s33, 0
      %p68 = por %p66, %p67
      %p69 = scmp.ne.s32.totalorder %s55, %s56
      %p70 = scmp.eq.s32.totalorder %s34, 1
      %p71 = por %p69, %p70
      %p73 = scmp.ne.s32.totalorder %s56, %s72
      %p74 = scmp.eq.s32.totalorder %s34, 0
      %p75 = por %p73, %p74
      %s76 = ssub.s32 %s35, %s47
      %p77 = scmp.eq.s32.totalorder %s76, 0
      %s79 = sadd.s32 %s78, 1
      %s80 = scalar_select %p77, %s78, %s79
      %p83 = pneg %p77
      %p84 = scmp.eq.s32.totalorder %s28, 1
      %p85 = por %p83, %p84
      %p86 = scmp.ne.s32.totalorder %s78, %s81
      %p87 = scmp.eq.s32.totalorder %s28, 0
      %p88 = por %p86, %p87
      %p89 = scmp.ne.s32.totalorder %s78, %s81
      %p90 = scmp.eq.s32.totalorder %s33, 1
      %p91 = por %p89, %p90
      %p92 = scmp.ne.s32.totalorder %s81, %s82
      %p93 = scmp.eq.s32.totalorder %s33, 0
      %p94 = por %p92, %p93
      %p95 = scmp.ne.s32.totalorder %s81, %s82
      %p96 = scmp.eq.s32.totalorder %s34, 1
      %p97 = por %p95, %p96
      %p99 = scmp.ne.s32.totalorder %s82, %s98
      %p100 = scmp.eq.s32.totalorder %s34, 0
      %p101 = por %p99, %p100
      %s102 = ssub.s32 %s35, %s47
      %p103 = scmp.eq.s32.totalorder %s102, 0
      %s105 = sadd.s32 %s104, 1
      %s106 = scalar_select %p103, %s104, %s105
      %p109 = pneg %p103
      %p110 = scmp.eq.s32.totalorder %s28, 1
      %p111 = por %p109, %p110
      %p112 = scmp.ne.s32.totalorder %s104, %s107
      %p113 = scmp.eq.s32.totalorder %s28, 0
      %p114 = por %p112, %p113
      %p115 = scmp.ne.s32.totalorder %s104, %s107
      %p116 = scmp.eq.s32.totalorder %s33, 1
      %p117 = por %p115, %p116
      %p118 = scmp.ne.s32.totalorder %s107, %s108
      %p119 = scmp.eq.s32.totalorder %s33, 0
      %p120 = por %p118, %p119
      %p121 = scmp.ne.s32.totalorder %s107, %s108
      %p122 = scmp.eq.s32.totalorder %s34, 1
      %p123 = por %p121, %p122
      %p125 = scmp.ne.s32.totalorder %s108, %s124
      %p126 = scmp.eq.s32.totalorder %s34, 0
      %p127 = por %p125, %p126
      %s129 = sadd.s32 %s128, 1
      %p132 = scmp.eq.s32.totalorder %s28, 1
      %p133 = scmp.ne.s32.totalorder %s128, %s130
      %p134 = scmp.eq.s32.totalorder %s28, 0
      %p135 = por %p133, %p134
      %p136 = scmp.ne.s32.totalorder %s128, %s130
      %p137 = scmp.eq.s32.totalorder %s33, 1
      %p138 = por %p136, %p137
      %p139 = scmp.ne.s32.totalorder %s130, %s131
      %p140 = scmp.eq.s32.totalorder %s33, 0
      %p141 = por %p139, %p140
      %p142 = scmp.ne.s32.totalorder %s130, %s131
      %p143 = scmp.eq.s32.totalorder %s34, 1
      %p144 = por %p142, %p143
      %p146 = scmp.ne.s32.totalorder %s131, %s145
      %p147 = scmp.eq.s32.totalorder %s34, 0
      %p148 = por %p146, %p147
      %s150 = sadd.s32 %s149, 1
      %p153 = scmp.eq.s32.totalorder %s28, 1
      %p154 = scmp.ne.s32.totalorder %s149, %s151
      %p155 = scmp.eq.s32.totalorder %s28, 0
      %p156 = por %p154, %p155
      %p157 = scmp.ne.s32.totalorder %s149, %s151
      %p158 = scmp.eq.s32.totalorder %s33, 1
      %p159 = por %p157, %p158
      %p160 = scmp.ne.s32.totalorder %s151, %s152
      %p161 = scmp.eq.s32.totalorder %s33, 0
      %p162 = por %p160, %p161
      %p163 = scmp.ne.s32.totalorder %s151, %s152
      %p164 = scmp.eq.s32.totalorder %s34, 1
      %p165 = por %p163, %p164
      %p167 = scmp.ne.s32.totalorder %s152, %s166
      %p168 = scmp.eq.s32.totalorder %s34, 0
      %p169 = por %p167, %p168
      %s171 = sadd.s32 %s170, 1
      %p174 = scmp.eq.s32.totalorder %s28, 1
      %p175 = scmp.ne.s32.totalorder %s170, %s172
      %p176 = scmp.eq.s32.totalorder %s28, 0
      %p177 = por %p175, %p176
      %p178 = scmp.ne.s32.totalorder %s170, %s172
      %p179 = scmp.eq.s32.totalorder %s33, 1
      %p180 = por %p178, %p179
      %p181 = scmp.ne.s32.totalorder %s172, %s173
      %p182 = scmp.eq.s32.totalorder %s33, 0
      %p183 = por %p181, %p182
      %p184 = scmp.ne.s32.totalorder %s172, %s173
      %p185 = scmp.eq.s32.totalorder %s34, 1
      %p186 = por %p184, %p185
      %p188 = scmp.ne.s32.totalorder %s173, %s187
      %p189 = scmp.eq.s32.totalorder %s34, 0
      %p190 = por %p188, %p189
      %s192 = sadd.s32 %s191, 1
      %p195 = scmp.eq.s32.totalorder %s28, 1
      %p196 = scmp.ne.s32.totalorder %s191, %s193
      %p197 = scmp.eq.s32.totalorder %s28, 0
      %p198 = por %p196, %p197
      %p199 = scmp.ne.s32.totalorder %s191, %s193
      %p200 = scmp.eq.s32.totalorder %s33, 1
      %p201 = por %p199, %p200
      %p202 = scmp.ne.s32.totalorder %s193, %s194
      %p203 = scmp.eq.s32.totalorder %s33, 0
      %p204 = por %p202, %p203
      %p205 = scmp.ne.s32.totalorder %s193, %s194
      %p206 = scmp.eq.s32.totalorder %s34, 1
      %p207 = por %p205, %p206
      %p209 = scmp.ne.s32.totalorder %s194, %s208
      %p210 = scmp.eq.s32.totalorder %s34, 0
      %p211 = por %p209, %p210
      %s213 = sadd.s32 %s212, 1
      %p216 = scmp.eq.s32.totalorder %s28, 1
      %p217 = scmp.ne.s32.totalorder %s212, %s214
      %p218 = scmp.eq.s32.totalorder %s28, 0
      %p219 = por %p217, %p218
      %p220 = scmp.ne.s32.totalorder %s212, %s214
      %p221 = scmp.eq.s32.totalorder %s33, 1
      %p222 = por %p220, %p221
      %p223 = scmp.ne.s32.totalorder %s214, %s215
      %p224 = scmp.eq.s32.totalorder %s33, 0
      %p225 = por %p223, %p224
      %p226 = scmp.ne.s32.totalorder %s214, %s215
      %p227 = scmp.eq.s32.totalorder %s34, 1
      %p228 = por %p226, %p227
      %p230 = scmp.ne.s32.totalorder %s215, %s229
      %p231 = scmp.eq.s32.totalorder %s34, 0
      %p232 = por %p230, %p231
      %s234 = sadd.s32 %s233, 1
      %p237 = scmp.eq.s32.totalorder %s28, 1
      %p238 = scmp.ne.s32.totalorder %s233, %s235
      %p239 = scmp.eq.s32.totalorder %s28, 0
      %p240 = por %p238, %p239
      %p241 = scmp.ne.s32.totalorder %s233, %s235
      %p242 = scmp.eq.s32.totalorder %s33, 1
      %p243 = por %p241, %p242
      %p244 = scmp.ne.s32.totalorder %s235, %s236
      %p245 = scmp.eq.s32.totalorder %s33, 0
      %p246 = por %p244, %p245
      %p247 = scmp.ne.s32.totalorder %s235, %s236
      %p248 = scmp.eq.s32.totalorder %s34, 1
      %p249 = por %p247, %p248
      %p251 = scmp.ne.s32.totalorder %s236, %s250
      %p252 = scmp.eq.s32.totalorder %s34, 0
      %p253 = por %p251, %p252
      %s255 = sadd.s32 %s254, 1
      %p258 = scmp.eq.s32.totalorder %s28, 1
      %p259 = scmp.ne.s32.totalorder %s254, %s256
      %p260 = scmp.eq.s32.totalorder %s28, 0
      %p261 = por %p259, %p260
      %p262 = scmp.ne.s32.totalorder %s254, %s256
      %p263 = scmp.eq.s32.totalorder %s33, 1
      %p264 = por %p262, %p263
      %p265 = scmp.ne.s32.totalorder %s256, %s257
      %p266 = scmp.eq.s32.totalorder %s33, 0
      %p267 = por %p265, %p266
      %p268 = scmp.ne.s32.totalorder %s256, %s257
      %p269 = scmp.eq.s32.totalorder %s34, 1
      %p270 = por %p268, %p269
      %p272 = scmp.ne.s32.totalorder %s257, %s271
      %p273 = scmp.eq.s32.totalorder %s34, 0
      %p274 = por %p272, %p273
      %s276 = sadd.s32 %s275, 1
      %p279 = scmp.eq.s32.totalorder %s28, 1
      %p280 = scmp.ne.s32.totalorder %s275, %s277
      %p281 = scmp.eq.s32.totalorder %s28, 0
      %p282 = por %p280, %p281
      %p283 = scmp.ne.s32.totalorder %s275, %s277
      %p284 = scmp.eq.s32.totalorder %s33, 1
      %p285 = por %p283, %p284
      %p286 = scmp.ne.s32.totalorder %s277, %s278
      %p287 = scmp.eq.s32.totalorder %s33, 0
      %p288 = por %p286, %p287
      %p289 = scmp.ne.s32.totalorder %s277, %s278
      %p290 = scmp.eq.s32.totalorder %s34, 1
      %p291 = por %p289, %p290
      %p293 = scmp.ne.s32.totalorder %s278, %s292
      %p294 = scmp.eq.s32.totalorder %s34, 0
      %p295 = por %p293, %p294
      %s296 = ssub.s32 %s35, %s47
      %s297 = ssub.s32 %s36, %s43
      %s298 = sor.u32 %s296, %s297
      %p299 = scmp.eq.s32.totalorder %s298, 0
      %s301 = sadd.s32 %s300, 1
      %s302 = scalar_select %p299, %s300, %s301
      %p305 = pneg %p299
      %p306 = scmp.eq.s32.totalorder %s28, 1
      %p307 = por %p305, %p306
      %p308 = scmp.ne.s32.totalorder %s300, %s303
      %p309 = scmp.eq.s32.totalorder %s28, 0
      %p310 = por %p308, %p309
      %p311 = scmp.ne.s32.totalorder %s300, %s303
      %p312 = scmp.eq.s32.totalorder %s33, 1
      %p313 = por %p311, %p312
      %p314 = scmp.ne.s32.totalorder %s303, %s304
      %p315 = scmp.eq.s32.totalorder %s33, 0
      %p316 = por %p314, %p315
      %p317 = scmp.ne.s32.totalorder %s303, %s304
      %p318 = scmp.eq.s32.totalorder %s34, 1
      %p319 = por %p317, %p318
      %p321 = scmp.ne.s32.totalorder %s304, %s320
      %p322 = scmp.eq.s32.totalorder %s34, 0
      %p323 = por %p321, %p322
      %p324 = scmp.le.s32.totalorder 1, %s28
      %p325 = scmp.lt.s32.totalorder %s28, 3
      %p326 = pnand %p324, %p325
      %p327 = pneg %p326
      // Predicated region
      $region9: #{tpu_custom_call.1} parent=5 // pred_check
        _
      $region10: #{tpu_custom_call.1} parent=5 // pred_check_branch
        %329 = sbr.rel (%p326) target = $region12
      $region11: #{tpu_custom_call.1} parent=5 // pred_region
        %s330 = ssub.s32 %s28, 1
        // Predicated region
        $region13: #{tpu_custom_call.1} parent=11 // pred_check
          %p331 = pneg %p141
        $region14: #{tpu_custom_call.1} parent=11 // pred_check_branch
          %333 = sbr.rel (%p331) target = $region16
        $region15: #{tpu_custom_call.1} parent=11 // pred_region
          %s335 = ssub.s32 512, 512
          %336 = vsyncadd [#allocation11], %s335
          %s337 = sshll.u32 [#allocation10], 4
          %s338 = int_to_ptr.vmem [resolvable:$true] %s337
          %343 = dma.hbm_to_vmem [thread:$0]  %s3, 512, %s338, [#allocation11], 128, 128, 8
        $region16: #{tpu_custom_call.1} parent=11 // pred_fallthru
          _
        // Predicated region
        $region17: #{tpu_custom_call.1} parent=11 // pred_check
          %p344 = pneg %p162
        $region18: #{tpu_custom_call.1} parent=11 // pred_check_branch
          %346 = sbr.rel (%p344) target = $region20
        $region19: #{tpu_custom_call.1} parent=11 // pred_region
          %s348 = ssub.s32 512, 512
          %349 = vsyncadd [#allocation11], %s348
          %s350 = sshll.u32 [#allocation12], 4
          %s351 = int_to_ptr.vmem [resolvable:$true] %s350
          %356 = dma.hbm_to_vmem [thread:$0]  %s4, 512, %s351, [#allocation11], 128, 128, 8
        $region20: #{tpu_custom_call.1} parent=11 // pred_fallthru
          _
        // Predicated region
        $region21: #{tpu_custom_call.1} parent=11 // pred_check
          %p357 = pneg %p183
        $region22: #{tpu_custom_call.1} parent=11 // pred_check_branch
          %359 = sbr.rel (%p357) target = $region24
        $region23: #{tpu_custom_call.1} parent=11 // pred_region
          %s361 = ssub.s32 512, 512
          %362 = vsyncadd [#allocation14], %s361
          %s363 = sshll.u32 [#allocation13], 4
          %s364 = int_to_ptr.vmem [resolvable:$true] %s363
          %369 = dma.hbm_to_vmem [thread:$0]  %s5, 512, %s364, [#allocation14], 128, 128, 8
        $region24: #{tpu_custom_call.1} parent=11 // pred_fallthru
          _
        // Predicated region
        $region25: #{tpu_custom_call.1} parent=11 // pred_check
          %p370 = pneg %p204
        $region26: #{tpu_custom_call.1} parent=11 // pred_check_branch
          %372 = sbr.rel (%p370) target = $region28
        $region27: #{tpu_custom_call.1} parent=11 // pred_region
          %s374 = ssub.s32 512, 512
          %375 = vsyncadd [#allocation14], %s374
          %s376 = sshll.u32 [#allocation15], 4
          %s377 = int_to_ptr.vmem [resolvable:$true] %s376
          %382 = dma.hbm_to_vmem [thread:$0]  %s6, 512, %s377, [#allocation14], 128, 128, 8
        $region28: #{tpu_custom_call.1} parent=11 // pred_fallthru
          _
        // Predicated region
        $region29: #{tpu_custom_call.1} parent=11 // pred_check
          %p383 = pneg %p225
        $region30: #{tpu_custom_call.1} parent=11 // pred_check_branch
          %385 = sbr.rel (%p383) target = $region32
        $region31: #{tpu_custom_call.1} parent=11 // pred_region
          _
        $region32: #{tpu_custom_call.1} parent=11 // pred_fallthru
          _
        // Predicated region
        $region33: #{tpu_custom_call.1} parent=11 // pred_check
          %p386 = pneg %p246
        $region34: #{tpu_custom_call.1} parent=11 // pred_check_branch
          %388 = sbr.rel (%p386) target = $region36
        $region35: #{tpu_custom_call.1} parent=11 // pred_region
          _
        $region36: #{tpu_custom_call.1} parent=11 // pred_fallthru
          _
        // Predicated region
        $region37: #{tpu_custom_call.1} parent=11 // pred_check
          %p389 = pneg %p267
        $region38: #{tpu_custom_call.1} parent=11 // pred_check_branch
          %391 = sbr.rel (%p389) target = $region40
        $region39: #{tpu_custom_call.1} parent=11 // pred_region
          _
        $region40: #{tpu_custom_call.1} parent=11 // pred_fallthru
          _
        // Predicated region
        $region41: #{tpu_custom_call.1} parent=11 // pred_check
          %p392 = pneg %p288
        $region42: #{tpu_custom_call.1} parent=11 // pred_check_branch
          %394 = sbr.rel (%p392) target = $region44
        $region43: #{tpu_custom_call.1} parent=11 // pred_region
          _
        $region44: #{tpu_custom_call.1} parent=11 // pred_fallthru
          _
      $region12: #{tpu_custom_call.1} parent=5 // pred_fallthru
        _
      %p395 = scmp.lt.s32.totalorder %s28, 2
      // Predicated region
      $region45: #{tpu_custom_call.1} parent=5 // pred_check
        %p396 = pneg %p395
      $region46: #{tpu_custom_call.1} parent=5 // pred_check_branch
        %398 = sbr.rel (%p396) target = $region48
      $region47: #{tpu_custom_call.1} parent=5 // pred_region
        // Predicated region
        $region49: #{tpu_custom_call.1} parent=47 // pred_check
          %p399 = pneg %p62
        $region50: #{tpu_custom_call.1} parent=47 // pred_check_branch
          %401 = sbr.rel (%p399) target = $region52
        $region51: #{tpu_custom_call.1} parent=47 // pred_region
          %s402 = sand.u32 %s52, 1
          %s403 = scalar_lea.sflag [#allocation5], %s402
          %s404 = sand.u32 %s52, 1
          %s405 = smul.addr %s404, 8
          %s406 = scalar_lea.vmem [#allocation4], %s405
          %s408 = ssub.s32 128, 128
          %409 = vsyncadd %s403, %s408
          %s410 = sadd.s32 %s36, %s35
          %s411 = smul.addr %s410, 128
          %s412 = scalar_lea.hbm %s0, %s411
          %s414 = sshll.u32 %s406, 4
          %s415 = int_to_ptr.vmem [resolvable:$true] %s414
          %417 = dma.hbm_to_vmem [thread:$0]  %s412, 128, %s415, %s403
        $region52: #{tpu_custom_call.1} parent=47 // pred_fallthru
          _
        // Predicated region
        $region53: #{tpu_custom_call.1} parent=47 // pred_check
          %p418 = pneg %p88
        $region54: #{tpu_custom_call.1} parent=47 // pred_check_branch
          %420 = sbr.rel (%p418) target = $region56
        $region55: #{tpu_custom_call.1} parent=47 // pred_region
          %s421 = sand.u32 %s28, 1
          %s422 = scalar_lea.sflag [#allocation8], %s421
          %s423 = sand.u32 %s78, 1
          %s424 = smul.addr %s423, 8
          %s425 = scalar_lea.vmem [#allocation7], %s424
          %s427 = ssub.s32 128, 128
          %428 = vsyncadd %s422, %s427
          %s429 = smul.addr %s35, 128
          %s430 = scalar_lea.hbm %s1, %s429
          %s432 = sshll.u32 %s425, 4
          %s433 = int_to_ptr.vmem [resolvable:$true] %s432
          %435 = dma.hbm_to_vmem [thread:$0]  %s430, 128, %s433, %s422
        $region56: #{tpu_custom_call.1} parent=47 // pred_fallthru
          _
        // Predicated region
        $region57: #{tpu_custom_call.1} parent=47 // pred_check
          %p436 = pneg %p114
        $region58: #{tpu_custom_call.1} parent=47 // pred_check_branch
          %438 = sbr.rel (%p436) target = $region60
        $region59: #{tpu_custom_call.1} parent=47 // pred_region
          %s439 = sand.u32 %s28, 1
          %s440 = scalar_lea.sflag [#allocation8], %s439
          %s441 = sand.u32 %s104, 1
          %s442 = smul.addr %s441, 8
          %s443 = scalar_lea.vmem [#allocation9], %s442
          %s445 = ssub.s32 128, 128
          %446 = vsyncadd %s440, %s445
          %s447 = smul.addr %s35, 128
          %s448 = scalar_lea.hbm %s2, %s447
          %s450 = sshll.u32 %s443, 4
          %s451 = int_to_ptr.vmem [resolvable:$true] %s450
          %453 = dma.hbm_to_vmem [thread:$0]  %s448, 128, %s451, %s440
        $region60: #{tpu_custom_call.1} parent=47 // pred_fallthru
          _
      $region48: #{tpu_custom_call.1} parent=5 // pred_fallthru
        _
      %p454 = scmp.le.s32.totalorder 1, %s28
      %p455 = scmp.lt.s32.totalorder %s28, 3
      %p456 = pnand %p454, %p455
      %p457 = pneg %p456
      // Predicated region
      $region61: #{tpu_custom_call.1} parent=5 // pred_check
        _
      $region62: #{tpu_custom_call.1} parent=5 // pred_check_branch
        %459 = sbr.rel (%p456) target = $region64
      $region63: #{tpu_custom_call.1} parent=5 // pred_region
        %s460 = ssub.s32 %s28, 1
        %s461 = sand.u32 %s55, 1
        %s462 = scalar_lea.sflag [#allocation5], %s461
        %s463 = sand.u32 %s55, 1
        %s464 = smul.addr %s463, 8
        %s465 = scalar_lea.vmem [#allocation4], %s464
        // Predicated region
        $region65: #{tpu_custom_call.1} parent=63 // pred_check
          %p466 = pneg %p68
        $region66: #{tpu_custom_call.1} parent=63 // pred_check_branch
          %468 = sbr.rel (%p466) target = $region68
        $region67: #{tpu_custom_call.1} parent=63 // pred_region
          %469 = dma.done %s462, 128
        $region68: #{tpu_custom_call.1} parent=63 // pred_fallthru
          _
        %s470 = sand.u32 %s33, 1
        %s471 = scalar_lea.sflag [#allocation8], %s470
        %s472 = sand.u32 %s81, 1
        %s473 = smul.addr %s472, 8
        %s474 = scalar_lea.vmem [#allocation7], %s473
        // Predicated region
        $region69: #{tpu_custom_call.1} parent=63 // pred_check
          %p475 = pneg %p94
        $region70: #{tpu_custom_call.1} parent=63 // pred_check_branch
          %477 = sbr.rel (%p475) target = $region72
        $region71: #{tpu_custom_call.1} parent=63 // pred_region
          %478 = dma.done %s471, 128
        $region72: #{tpu_custom_call.1} parent=63 // pred_fallthru
          _
        %s479 = sand.u32 %s33, 1
        %s480 = scalar_lea.sflag [#allocation8], %s479
        %s481 = sand.u32 %s107, 1
        %s482 = smul.addr %s481, 8
        %s483 = scalar_lea.vmem [#allocation9], %s482
        // Predicated region
        $region73: #{tpu_custom_call.1} parent=63 // pred_check
          %p484 = pneg %p120
        $region74: #{tpu_custom_call.1} parent=63 // pred_check_branch
          %486 = sbr.rel (%p484) target = $region76
        $region75: #{tpu_custom_call.1} parent=63 // pred_region
          %487 = dma.done %s480, 128
        $region76: #{tpu_custom_call.1} parent=63 // pred_fallthru
          _
        // Predicated region
        $region77: #{tpu_custom_call.1} parent=63 // pred_check
          %p488 = pneg %p141
        $region78: #{tpu_custom_call.1} parent=63 // pred_check_branch
          %490 = sbr.rel (%p488) target = $region80
        $region79: #{tpu_custom_call.1} parent=63 // pred_region
          %491 = dma.done [#allocation11], 512
        $region80: #{tpu_custom_call.1} parent=63 // pred_fallthru
          _
        // Predicated region
        $region81: #{tpu_custom_call.1} parent=63 // pred_check
          %p492 = pneg %p162
        $region82: #{tpu_custom_call.1} parent=63 // pred_check_branch
          %494 = sbr.rel (%p492) target = $region84
        $region83: #{tpu_custom_call.1} parent=63 // pred_region
          %495 = dma.done [#allocation11], 512
        $region84: #{tpu_custom_call.1} parent=63 // pred_fallthru
          _
        // Predicated region
        $region85: #{tpu_custom_call.1} parent=63 // pred_check
          %p496 = pneg %p183
        $region86: #{tpu_custom_call.1} parent=63 // pred_check_branch
          %498 = sbr.rel (%p496) target = $region88
        $region87: #{tpu_custom_call.1} parent=63 // pred_region
          %499 = dma.done [#allocation14], 512
        $region88: #{tpu_custom_call.1} parent=63 // pred_fallthru
          _
        // Predicated region
        $region89: #{tpu_custom_call.1} parent=63 // pred_check
          %p500 = pneg %p204
        $region90: #{tpu_custom_call.1} parent=63 // pred_check_branch
          %502 = sbr.rel (%p500) target = $region92
        $region91: #{tpu_custom_call.1} parent=63 // pred_region
          %503 = dma.done [#allocation14], 512
        $region92: #{tpu_custom_call.1} parent=63 // pred_fallthru
          _
        %s504 = sand.u32 %s55, 1
        %s505 = scalar_lea.sflag [#allocation5], %s504
        %s506 = sand.u32 %s55, 1
        %s507 = smul.addr %s506, 8
        %s508 = scalar_lea.vmem [#allocation4], %s507
        %p509 = pneg %p68
        %p510 = pneg %p65
        %s511 = sand.u32 %s33, 1
        %s512 = scalar_lea.sflag [#allocation8], %s511
        %s513 = sand.u32 %s81, 1
        %s514 = smul.addr %s513, 8
        %s515 = scalar_lea.vmem [#allocation7], %s514
        %p516 = pneg %p94
        %p517 = pneg %p91
        %s518 = sand.u32 %s33, 1
        %s519 = scalar_lea.sflag [#allocation8], %s518
        %s520 = sand.u32 %s107, 1
        %s521 = smul.addr %s520, 8
        %s522 = scalar_lea.vmem [#allocation9], %s521
        %p523 = pneg %p120
        %p524 = pneg %p117
        %p525 = pneg %p141
        %p526 = pneg %p138
        %p527 = pneg %p162
        %p528 = pneg %p159
        %p529 = pneg %p183
        %p530 = pneg %p180
        %p531 = pneg %p204
        %p532 = pneg %p201
        %p533 = pneg %p225
        %p534 = pneg %p222
        %p535 = pneg %p246
        %p536 = pneg %p243
        %p537 = pneg %p267
        %p538 = pneg %p264
        %p539 = pneg %p288
        %p540 = pneg %p285
        %p541 = pneg %p316
        %p542 = pneg %p313
        %s543 = sand.u32 %s303, 1
        %s544 = scalar_lea.sflag [#allocation6], %s543
        %s545 = sand.u32 %s303, 1
        %s546 = smul.addr %s545, 8
        %s547 = scalar_lea.vmem [#allocation16], %s546
        %p548 = scmp.eq.s32.totalorder %s38, 0
        // Predicated region
        $region93: #{tpu_custom_call.1} parent=63 // pred_check
          %p549 = pneg %p548
        $region94: #{tpu_custom_call.1} parent=63 // pred_check_branch
          %551 = sbr.rel (%p549) target = $region96
        $region95: #{tpu_custom_call.1} parent=63 // pred_region
          %v552 = vld [vmem:[%s474] sm:$0xff]
          %v553 = vld [vmem:[#allocation12] sm:$0xff]
          %v554 = vld [vmem:[#allocation12 + $0x8] sm:$0xff]
          %v555 = vld [vmem:[#allocation12 + $0x10] sm:$0xff]
          %v556 = vld [vmem:[#allocation12 + $0x18] sm:$0xff]
          %v557 = vld [vmem:[%s8] sm:$0x1]
          %v559 = vlaneseq
          %v560 = vshrl.u32 %v559, 7
          %v561 = vsub.s32 0, %v560
          %v562 = vrot.slane %v557, %v561
          %vm564 = vcmask 261120
          %v566 = vsel %vm564, %v552, 0
          %568 = vmatprep.subr.mxu0 0.0
          %569 = vmatpush1.msra.mxu0 0.0
          %570 = vmatprep.subr.mxu0 0.0
          %571 = vmatpush1.msra.mxu0 0.0
          %572 = vmatprep.subr.mxu0 0.0
          %573 = vmatpush1.msra.mxu0 0.0
          %574 = vmatprep.subr.mxu0 0.0
          %575 = vmatpush1.msra.mxu0 0.0
          %576 = vmatprep.subr.mxu0 0.0
          %577 = vmatpush1.msra.mxu0 0.0
          %578 = vmatprep.subr.mxu0 0.0
          %579 = vmatpush1.msra.mxu0 0.0
          %580 = vmatprep.subr.mxu0 0.0
          %581 = vmatpush1.msra.mxu0 0.0
          %582 = vmatprep.subr.mxu0 0.0
          %583 = vmatpush1.msra.mxu0 0.0
          %584 = vmatprep.subr.mxu0 0.0
          %585 = vmatpush1.msra.mxu0 0.0
          %586 = vmatprep.subr.mxu0 0.0
          %587 = vmatpush1.msra.mxu0 0.0
          %588 = vmatprep.subr.mxu0 0.0
          %589 = vmatpush1.msra.mxu0 0.0
          %590 = vmatprep.subr.mxu0 0.0
          %591 = vmatpush1.msra.mxu0 0.0
          %592 = vmatprep.subr.mxu0 0.0
          %593 = vmatpush1.msra.mxu0 %v556
          %594 = vmatprep.subr.mxu0 0.0
          %595 = vmatpush1.msra.mxu0 %v555
          %596 = vmatprep.subr.mxu0 0.0
          %597 = vmatpush1.msra.mxu0 %v554
          %598 = vmatprep.subr.mxu0 0.0
          %599 = vmatpush1.msra.mxu0 %v553
          %600 = vmatprep.subr.mxu0 0.0
          %601 = vmatpush2.msra.mxu0 0.0
          %602 = vmatprep.subr.mxu0 0.0
          %603 = vmatpush2.msra.mxu0 0.0
          %604 = vmatprep.subr.mxu0 0.0
          %605 = vmatpush2.msra.mxu0 0.0
          %606 = vmatprep.subr.mxu0 0.0
          %607 = vmatpush2.msra.mxu0 0.0
          %608 = vmatprep.subr.mxu0 0.0
          %609 = vmatpush2.msra.mxu0 0.0
          %610 = vmatprep.subr.mxu0 0.0
          %611 = vmatpush2.msra.mxu0 0.0
          %612 = vmatprep.subr.mxu0 0.0
          %613 = vmatpush2.msra.mxu0 0.0
          %614 = vmatprep.subr.mxu0 0.0
          %615 = vmatpush2.msra.mxu0 0.0
          %616 = vmatprep.subr.mxu0 0.0
          %617 = vmatpush2.msra.mxu0 0.0
          %618 = vmatprep.subr.mxu0 0.0
          %619 = vmatpush2.msra.mxu0 0.0
          %620 = vmatprep.subr.mxu0 0.0
          %621 = vmatpush2.msra.mxu0 0.0
          %622 = vmatprep.subr.mxu0 0.0
          %623 = vmatpush2.msra.mxu0 0.0
          %624 = vmatprep.subr.mxu0 0.0
          %625 = vmatpush2.msra.mxu0 0.0
          %626 = vmatprep.subr.mxu0 0.0
          %627 = vmatpush2.msra.mxu0 0.0
          %628 = vmatprep.subr.mxu0 0.0
          %629 = vmatpush2.msra.mxu0 0.0
          %630 = vmatprep.subr.mxu0 0.0
          %631 = vmatpush2.msra.mxu0 0.0
          %632 = vmatprep.mubr.f32.mxu0 0.0
          %633 = vmatmul.mubr.f32.gmra.mxu0 %v566
          %v634 = vpop.f32.mrf.mxu0
          %v635 = vadd.f32 %v562, %v634
          %v636 = vpop.f32.mrf.mxu0
          %637 = vdwg.mxu0
          %v638 = vld [vmem:[%s483] sm:$0xff]
          %v639 = vld [vmem:[#allocation13] sm:$0xff]
          %v640 = vld [vmem:[#allocation13 + $0x8] sm:$0xff]
          %v641 = vld [vmem:[#allocation13 + $0x10] sm:$0xff]
          %v642 = vld [vmem:[#allocation13 + $0x18] sm:$0xff]
          %v643 = vld [vmem:[%s9] sm:$0x1]
          %v645 = vlaneseq
          %v646 = vshrl.u32 %v645, 7
          %v647 = vsub.s32 0, %v646
          %v648 = vrot.slane %v643, %v647
          %v651 = vsel %vm564, %v638, 0
          %653 = vmatprep.subr.mxu0 0.0
          %654 = vmatpush1.msra.mxu0 0.0
          %655 = vmatprep.subr.mxu0 0.0
          %656 = vmatpush1.msra.mxu0 0.0
          %657 = vmatprep.subr.mxu0 0.0
          %658 = vmatpush1.msra.mxu0 0.0
          %659 = vmatprep.subr.mxu0 0.0
          %660 = vmatpush1.msra.mxu0 0.0
          %661 = vmatprep.subr.mxu0 0.0
          %662 = vmatpush1.msra.mxu0 0.0
          %663 = vmatprep.subr.mxu0 0.0
          %664 = vmatpush1.msra.mxu0 0.0
          %665 = vmatprep.subr.mxu0 0.0
          %666 = vmatpush1.msra.mxu0 0.0
          %667 = vmatprep.subr.mxu0 0.0
          %668 = vmatpush1.msra.mxu0 0.0
          %669 = vmatprep.subr.mxu0 0.0
          %670 = vmatpush1.msra.mxu0 0.0
          %671 = vmatprep.subr.mxu0 0.0
          %672 = vmatpush1.msra.mxu0 0.0
          %673 = vmatprep.subr.mxu0 0.0
          %674 = vmatpush1.msra.mxu0 0.0
          %675 = vmatprep.subr.mxu0 0.0
          %676 = vmatpush1.msra.mxu0 0.0
          %677 = vmatprep.subr.mxu0 0.0
          %678 = vmatpush1.msra.mxu0 %v642
          %679 = vmatprep.subr.mxu0 0.0
          %680 = vmatpush1.msra.mxu0 %v641
          %681 = vmatprep.subr.mxu0 0.0
          %682 = vmatpush1.msra.mxu0 %v640
          %683 = vmatprep.subr.mxu0 0.0
          %684 = vmatpush1.msra.mxu0 %v639
          %685 = vmatprep.subr.mxu0 0.0
          %686 = vmatpush2.msra.mxu0 0.0
          %687 = vmatprep.subr.mxu0 0.0
          %688 = vmatpush2.msra.mxu0 0.0
          %689 = vmatprep.subr.mxu0 0.0
          %690 = vmatpush2.msra.mxu0 0.0
          %691 = vmatprep.subr.mxu0 0.0
          %692 = vmatpush2.msra.mxu0 0.0
          %693 = vmatprep.subr.mxu0 0.0
          %694 = vmatpush2.msra.mxu0 0.0
          %695 = vmatprep.subr.mxu0 0.0
          %696 = vmatpush2.msra.mxu0 0.0
          %697 = vmatprep.subr.mxu0 0.0
          %698 = vmatpush2.msra.mxu0 0.0
          %699 = vmatprep.subr.mxu0 0.0
          %700 = vmatpush2.msra.mxu0 0.0
          %701 = vmatprep.subr.mxu0 0.0
          %702 = vmatpush2.msra.mxu0 0.0
          %703 = vmatprep.subr.mxu0 0.0
          %704 = vmatpush2.msra.mxu0 0.0
          %705 = vmatprep.subr.mxu0 0.0
          %706 = vmatpush2.msra.mxu0 0.0
          %707 = vmatprep.subr.mxu0 0.0
          %708 = vmatpush2.msra.mxu0 0.0
          %709 = vmatprep.subr.mxu0 0.0
          %710 = vmatpush2.msra.mxu0 0.0
          %711 = vmatprep.subr.mxu0 0.0
          %712 = vmatpush2.msra.mxu0 0.0
          %713 = vmatprep.subr.mxu0 0.0
          %714 = vmatpush2.msra.mxu0 0.0
          %715 = vmatprep.subr.mxu0 0.0
          %716 = vmatpush2.msra.mxu0 0.0
          %717 = vmatprep.mubr.f32.mxu0 0.0
          %718 = vmatmul.mubr.f32.gmra.mxu0 %v651
          %v719 = vpop.f32.mrf.mxu0
          %v720 = vadd.f32 %v648, %v719
          %v721 = vpop.f32.mrf.mxu0
          %722 = vdwg.mxu0
          %723 = vst.msk [vmem:[#allocation2] sm:$0xff] %vm564, %v635
          %724 = vst.msk [vmem:[#allocation3] sm:$0xff] %vm564, %v720
        $region96: #{tpu_custom_call.1} parent=63 // pred_fallthru
          _
        %v725 = vld [vmem:[%s465] sm:$0xff]
        %v726 = vld [vmem:[#allocation10] sm:$0xff]
        %v727 = vld [vmem:[#allocation10 + $0x8] sm:$0xff]
        %v728 = vld [vmem:[#allocation10 + $0x10] sm:$0xff]
        %v729 = vld [vmem:[#allocation10 + $0x18] sm:$0xff]
        %v730 = vld [vmem:[%s7] sm:$0x1]
        %v732 = vlaneseq
        %v733 = vshrl.u32 %v732, 7
        %v734 = vsub.s32 0, %v733
        %v735 = vrot.slane %v730, %v734
        %vm737 = vcmask 261120
        %v739 = vsel %vm737, %v725, 0
        %741 = vmatprep.subr.mxu0 0.0
        %742 = vmatpush1.msra.mxu0 0.0
        %743 = vmatprep.subr.mxu0 0.0
        %744 = vmatpush1.msra.mxu0 0.0
        %745 = vmatprep.subr.mxu0 0.0
        %746 = vmatpush1.msra.mxu0 0.0
        %747 = vmatprep.subr.mxu0 0.0
        %748 = vmatpush1.msra.mxu0 0.0
        %749 = vmatprep.subr.mxu0 0.0
        %750 = vmatpush1.msra.mxu0 0.0
        %751 = vmatprep.subr.mxu0 0.0
        %752 = vmatpush1.msra.mxu0 0.0
        %753 = vmatprep.subr.mxu0 0.0
        %754 = vmatpush1.msra.mxu0 0.0
        %755 = vmatprep.subr.mxu0 0.0
        %756 = vmatpush1.msra.mxu0 0.0
        %757 = vmatprep.subr.mxu0 0.0
        %758 = vmatpush1.msra.mxu0 0.0
        %759 = vmatprep.subr.mxu0 0.0
        %760 = vmatpush1.msra.mxu0 0.0
        %761 = vmatprep.subr.mxu0 0.0
        %762 = vmatpush1.msra.mxu0 0.0
        %763 = vmatprep.subr.mxu0 0.0
        %764 = vmatpush1.msra.mxu0 0.0
        %765 = vmatprep.subr.mxu0 0.0
        %766 = vmatpush1.msra.mxu0 %v729
        %767 = vmatprep.subr.mxu0 0.0
        %768 = vmatpush1.msra.mxu0 %v728
        %769 = vmatprep.subr.mxu0 0.0
        %770 = vmatpush1.msra.mxu0 %v727
        %771 = vmatprep.subr.mxu0 0.0
        %772 = vmatpush1.msra.mxu0 %v726
        %773 = vmatprep.subr.mxu0 0.0
        %774 = vmatpush2.msra.mxu0 0.0
        %775 = vmatprep.subr.mxu0 0.0
        %776 = vmatpush2.msra.mxu0 0.0
        %777 = vmatprep.subr.mxu0 0.0
        %778 = vmatpush2.msra.mxu0 0.0
        %779 = vmatprep.subr.mxu0 0.0
        %780 = vmatpush2.msra.mxu0 0.0
        %781 = vmatprep.subr.mxu0 0.0
        %782 = vmatpush2.msra.mxu0 0.0
        %783 = vmatprep.subr.mxu0 0.0
        %784 = vmatpush2.msra.mxu0 0.0
        %785 = vmatprep.subr.mxu0 0.0
        %786 = vmatpush2.msra.mxu0 0.0
        %787 = vmatprep.subr.mxu0 0.0
        %788 = vmatpush2.msra.mxu0 0.0
        %789 = vmatprep.subr.mxu0 0.0
        %790 = vmatpush2.msra.mxu0 0.0
        %791 = vmatprep.subr.mxu0 0.0
        %792 = vmatpush2.msra.mxu0 0.0
        %793 = vmatprep.subr.mxu0 0.0
        %794 = vmatpush2.msra.mxu0 0.0
        %795 = vmatprep.subr.mxu0 0.0
        %796 = vmatpush2.msra.mxu0 0.0
        %797 = vmatprep.subr.mxu0 0.0
        %798 = vmatpush2.msra.mxu0 0.0
        %799 = vmatprep.subr.mxu0 0.0
        %800 = vmatpush2.msra.mxu0 0.0
        %801 = vmatprep.subr.mxu0 0.0
        %802 = vmatpush2.msra.mxu0 0.0
        %803 = vmatprep.subr.mxu0 0.0
        %804 = vmatpush2.msra.mxu0 0.0
        %805 = vmatprep.mubr.f32.mxu0 0.0
        %806 = vmatmul.mubr.f32.gmra.mxu0 %v739
        %v807 = vpop.f32.mrf.mxu0
        %v808 = vadd.f32 %v735, %v807
        %v809 = vpop.f32.mrf.mxu0
        %810 = vdwg.mxu0
        %v811 = vmul.f32 %v808, 0.35355338
        %v812 = vld [vmem:[#allocation2] sm:$0xff]
        %v813 = vld [vmem:[#allocation3] sm:$0xff]
        %vm814 = vcmask 64512
        %v816 = vsel %vm814, %v811, 0
        %v819 = vsel %vm814, %v812, 0
        %821 = vmatprep.subr.mxu0 0.0
        %822 = vmatpush1.xpose.msra.mxu0 0.0
        %823 = vmatprep.subr.mxu0 0.0
        %824 = vmatpush1.xpose.msra.mxu0 0.0
        %825 = vmatprep.subr.mxu0 0.0
        %826 = vmatpush1.xpose.msra.mxu0 0.0
        %827 = vmatprep.subr.mxu0 0.0
        %828 = vmatpush1.xpose.msra.mxu0 0.0
        %829 = vmatprep.subr.mxu0 0.0
        %830 = vmatpush1.xpose.msra.mxu0 0.0
        %831 = vmatprep.subr.mxu0 0.0
        %832 = vmatpush1.xpose.msra.mxu0 0.0
        %833 = vmatprep.subr.mxu0 0.0
        %834 = vmatpush1.xpose.msra.mxu0 0.0
        %835 = vmatprep.subr.mxu0 0.0
        %836 = vmatpush1.xpose.msra.mxu0 0.0
        %837 = vmatprep.subr.mxu0 0.0
        %838 = vmatpush1.xpose.msra.mxu0 0.0
        %839 = vmatprep.subr.mxu0 0.0
        %840 = vmatpush1.xpose.msra.mxu0 0.0
        %841 = vmatprep.subr.mxu0 0.0
        %842 = vmatpush1.xpose.msra.mxu0 0.0
        %843 = vmatprep.subr.mxu0 0.0
        %844 = vmatpush1.xpose.msra.mxu0 0.0
        %845 = vmatprep.subr.mxu0 0.0
        %846 = vmatpush1.xpose.msra.mxu0 0.0
        %847 = vmatprep.subr.mxu0 0.0
        %848 = vmatpush1.xpose.msra.mxu0 0.0
        %849 = vmatprep.subr.mxu0 0.0
        %850 = vmatpush1.xpose.msra.mxu0 0.0
        %851 = vmatprep.subr.mxu0 0.0
        %852 = vmatpush1.xpose.msra.mxu0 %v819
        %853 = vmatprep.subr.mxu0 0.0
        %854 = vmatpush2.xpose.msra.mxu0 0.0
        %855 = vmatprep.subr.mxu0 0.0
        %856 = vmatpush2.xpose.msra.mxu0 0.0
        %857 = vmatprep.subr.mxu0 0.0
        %858 = vmatpush2.xpose.msra.mxu0 0.0
        %859 = vmatprep.subr.mxu0 0.0
        %860 = vmatpush2.xpose.msra.mxu0 0.0
        %861 = vmatprep.subr.mxu0 0.0
        %862 = vmatpush2.xpose.msra.mxu0 0.0
        %863 = vmatprep.subr.mxu0 0.0
        %864 = vmatpush2.xpose.msra.mxu0 0.0
        %865 = vmatprep.subr.mxu0 0.0
        %866 = vmatpush2.xpose.msra.mxu0 0.0
        %867 = vmatprep.subr.mxu0 0.0
        %868 = vmatpush2.xpose.msra.mxu0 0.0
        %869 = vmatprep.subr.mxu0 0.0
        %870 = vmatpush2.xpose.msra.mxu0 0.0
        %871 = vmatprep.subr.mxu0 0.0
        %872 = vmatpush2.xpose.msra.mxu0 0.0
        %873 = vmatprep.subr.mxu0 0.0
        %874 = vmatpush2.xpose.msra.mxu0 0.0
        %875 = vmatprep.subr.mxu0 0.0
        %876 = vmatpush2.xpose.msra.mxu0 0.0
        %877 = vmatprep.subr.mxu0 0.0
        %878 = vmatpush2.xpose.msra.mxu0 0.0
        %879 = vmatprep.subr.mxu0 0.0
        %880 = vmatpush2.xpose.msra.mxu0 0.0
        %881 = vmatprep.subr.mxu0 0.0
        %882 = vmatpush2.xpose.msra.mxu0 0.0
        %883 = vmatprep.subr.mxu0 0.0
        %884 = vmatpush2.xpose.msra.mxu0 0.0
        %885 = vmatprep.mubr.f32.mxu0 0.0
        %886 = vmatmul.mubr.f32.gmra.mxu0 %v816
        %v887 = vpop.f32.mrf.mxu0
        %v888 = vadd.f32 0.0, %v887
        %v889 = vpop.f32.mrf.mxu0
        %890 = vdwg.mxu0
        %v891 = vsel %vm814, %v888, -inf
        %892 = vmax.xlane.f32.xlu0 %v891
        %v893 = vpop.xlane.xlu0 %892
        %v894 = vsub.f32 %v888, %v893
        %v895 = vmul.f32 %v894, 1.442695
        %v896 = vpow.pop %v895
        %v897 = vsel %vm814, %v896, 0.0
        %898 = vadd.xlane.f32.xlu0 %v897
        %v899 = vpop.xlane.xlu0 %898
        %v900 = vrcp.pop %v899
        %v902 = vsel %vm814, %v896, 0
        %904 = vmatprep.subr.mxu0 0.0
        %905 = vmatpush1.msra.mxu0 0.0
        %906 = vmatprep.subr.mxu0 0.0
        %907 = vmatpush1.msra.mxu0 0.0
        %908 = vmatprep.subr.mxu0 0.0
        %909 = vmatpush1.msra.mxu0 0.0
        %910 = vmatprep.subr.mxu0 0.0
        %911 = vmatpush1.msra.mxu0 0.0
        %912 = vmatprep.subr.mxu0 0.0
        %913 = vmatpush1.msra.mxu0 0.0
        %914 = vmatprep.subr.mxu0 0.0
        %915 = vmatpush1.msra.mxu0 0.0
        %916 = vmatprep.subr.mxu0 0.0
        %917 = vmatpush1.msra.mxu0 0.0
        %918 = vmatprep.subr.mxu0 0.0
        %919 = vmatpush1.msra.mxu0 0.0
        %920 = vmatprep.subr.mxu0 0.0
        %921 = vmatpush1.msra.mxu0 0.0
        %922 = vmatprep.subr.mxu0 0.0
        %923 = vmatpush1.msra.mxu0 0.0
        %924 = vmatprep.subr.mxu0 0.0
        %925 = vmatpush1.msra.mxu0 0.0
        %926 = vmatprep.subr.mxu0 0.0
        %927 = vmatpush1.msra.mxu0 0.0
        %928 = vmatprep.subr.mxu0 0.0
        %929 = vmatpush1.msra.mxu0 0.0
        %930 = vmatprep.subr.mxu0 0.0
        %931 = vmatpush1.msra.mxu0 0.0
        %932 = vmatprep.subr.mxu0 0.0
        %933 = vmatpush1.msra.mxu0 0.0
        %934 = vmatprep.subr.mxu0 0.0
        %935 = vmatpush1.msra.mxu0 %v813
        %936 = vmatprep.subr.mxu0 0.0
        %937 = vmatpush2.msra.mxu0 0.0
        %938 = vmatprep.subr.mxu0 0.0
        %939 = vmatpush2.msra.mxu0 0.0
        %940 = vmatprep.subr.mxu0 0.0
        %941 = vmatpush2.msra.mxu0 0.0
        %942 = vmatprep.subr.mxu0 0.0
        %943 = vmatpush2.msra.mxu0 0.0
        %944 = vmatprep.subr.mxu0 0.0
        %945 = vmatpush2.msra.mxu0 0.0
        %946 = vmatprep.subr.mxu0 0.0
        %947 = vmatpush2.msra.mxu0 0.0
        %948 = vmatprep.subr.mxu0 0.0
        %949 = vmatpush2.msra.mxu0 0.0
        %950 = vmatprep.subr.mxu0 0.0
        %951 = vmatpush2.msra.mxu0 0.0
        %952 = vmatprep.subr.mxu0 0.0
        %953 = vmatpush2.msra.mxu0 0.0
        %954 = vmatprep.subr.mxu0 0.0
        %955 = vmatpush2.msra.mxu0 0.0
        %956 = vmatprep.subr.mxu0 0.0
        %957 = vmatpush2.msra.mxu0 0.0
        %958 = vmatprep.subr.mxu0 0.0
        %959 = vmatpush2.msra.mxu0 0.0
        %960 = vmatprep.subr.mxu0 0.0
        %961 = vmatpush2.msra.mxu0 0.0
        %962 = vmatprep.subr.mxu0 0.0
        %963 = vmatpush2.msra.mxu0 0.0
        %964 = vmatprep.subr.mxu0 0.0
        %965 = vmatpush2.msra.mxu0 0.0
        %966 = vmatprep.subr.mxu0 0.0
        %967 = vmatpush2.msra.mxu0 0.0
        %968 = vmatprep.mubr.f32.mxu0 0.0
        %969 = vmatmul.mubr.f32.gmra.mxu0 %v902
        %v970 = vpop.f32.mrf.mxu0
        %v971 = vadd.f32 0.0, %v970
        %v972 = vpop.f32.mrf.mxu0
        %973 = vdwg.mxu0
        %v974 = vmul.f32 %v971, %v900
        %975 = vrot.lane.b32.xlu0 %v811, 120
        %v976 = vpop.permute.xlu0 %975
        %977 = vrot.lane.b32.xlu0 %v812, 120
        %v978 = vpop.permute.xlu0 %977
        %v979 = vsel %vm814, %v976, 0
        %v981 = vsel %vm814, %v978, 0
        %983 = vmatprep.subr.mxu0 0.0
        %984 = vmatpush1.xpose.msra.mxu0 0.0
        %985 = vmatprep.subr.mxu0 0.0
        %986 = vmatpush1.xpose.msra.mxu0 0.0
        %987 = vmatprep.subr.mxu0 0.0
        %988 = vmatpush1.xpose.msra.mxu0 0.0
        %989 = vmatprep.subr.mxu0 0.0
        %990 = vmatpush1.xpose.msra.mxu0 0.0
        %991 = vmatprep.subr.mxu0 0.0
        %992 = vmatpush1.xpose.msra.mxu0 0.0
        %993 = vmatprep.subr.mxu0 0.0
        %994 = vmatpush1.xpose.msra.mxu0 0.0
        %995 = vmatprep.subr.mxu0 0.0
        %996 = vmatpush1.xpose.msra.mxu0 0.0
        %997 = vmatprep.subr.mxu0 0.0
        %998 = vmatpush1.xpose.msra.mxu0 0.0
        %999 = vmatprep.subr.mxu0 0.0
        %1000 = vmatpush1.xpose.msra.mxu0 0.0
        %1001 = vmatprep.subr.mxu0 0.0
        %1002 = vmatpush1.xpose.msra.mxu0 0.0
        %1003 = vmatprep.subr.mxu0 0.0
        %1004 = vmatpush1.xpose.msra.mxu0 0.0
        %1005 = vmatprep.subr.mxu0 0.0
        %1006 = vmatpush1.xpose.msra.mxu0 0.0
        %1007 = vmatprep.subr.mxu0 0.0
        %1008 = vmatpush1.xpose.msra.mxu0 0.0
        %1009 = vmatprep.subr.mxu0 0.0
        %1010 = vmatpush1.xpose.msra.mxu0 0.0
        %1011 = vmatprep.subr.mxu0 0.0
        %1012 = vmatpush1.xpose.msra.mxu0 0.0
        %1013 = vmatprep.subr.mxu0 0.0
        %1014 = vmatpush1.xpose.msra.mxu0 %v981
        %1015 = vmatprep.subr.mxu0 0.0
        %1016 = vmatpush2.xpose.msra.mxu0 0.0
        %1017 = vmatprep.subr.mxu0 0.0
        %1018 = vmatpush2.xpose.msra.mxu0 0.0
        %1019 = vmatprep.subr.mxu0 0.0
        %1020 = vmatpush2.xpose.msra.mxu0 0.0
        %1021 = vmatprep.subr.mxu0 0.0
        %1022 = vmatpush2.xpose.msra.mxu0 0.0
        %1023 = vmatprep.subr.mxu0 0.0
        %1024 = vmatpush2.xpose.msra.mxu0 0.0
        %1025 = vmatprep.subr.mxu0 0.0
        %1026 = vmatpush2.xpose.msra.mxu0 0.0
        %1027 = vmatprep.subr.mxu0 0.0
        %1028 = vmatpush2.xpose.msra.mxu0 0.0
        %1029 = vmatprep.subr.mxu0 0.0
        %1030 = vmatpush2.xpose.msra.mxu0 0.0
        %1031 = vmatprep.subr.mxu0 0.0
        %1032 = vmatpush2.xpose.msra.mxu0 0.0
        %1033 = vmatprep.subr.mxu0 0.0
        %1034 = vmatpush2.xpose.msra.mxu0 0.0
        %1035 = vmatprep.subr.mxu0 0.0
        %1036 = vmatpush2.xpose.msra.mxu0 0.0
        %1037 = vmatprep.subr.mxu0 0.0
        %1038 = vmatpush2.xpose.msra.mxu0 0.0
        %1039 = vmatprep.subr.mxu0 0.0
        %1040 = vmatpush2.xpose.msra.mxu0 0.0
        %1041 = vmatprep.subr.mxu0 0.0
        %1042 = vmatpush2.xpose.msra.mxu0 0.0
        %1043 = vmatprep.subr.mxu0 0.0
        %1044 = vmatpush2.xpose.msra.mxu0 0.0
        %1045 = vmatprep.subr.mxu0 0.0
        %1046 = vmatpush2.xpose.msra.mxu0 0.0
        %1047 = vmatprep.mubr.f32.mxu0 0.0
        %1048 = vmatmul.mubr.f32.gmra.mxu0 %v979
        %v1049 = vpop.f32.mrf.mxu0
        %v1050 = vadd.f32 0.0, %v1049
        %v1051 = vpop.f32.mrf.mxu0
        %1052 = vdwg.mxu0
        %v1053 = vsel %vm814, %v1050, -inf
        %1054 = vmax.xlane.f32.xlu0 %v1053
        %v1055 = vpop.xlane.xlu0 %1054
        %v1056 = vsub.f32 %v1050, %v1055
        %v1057 = vmul.f32 %v1056, 1.442695
        %v1058 = vpow.pop %v1057
        %v1059 = vsel %vm814, %v1058, 0.0
        %1060 = vadd.xlane.f32.xlu0 %v1059
        %v1061 = vpop.xlane.xlu0 %1060
        %v1062 = vrcp.pop %v1061
        %1064 = vrot.lane.b32.xlu0 %v813, 120
        %v1065 = vpop.permute.xlu0 %1064
        %v1068 = vsel %vm814, %v1058, 0
        %1070 = vmatprep.subr.mxu0 0.0
        %1071 = vmatpush1.msra.mxu0 0.0
        %1072 = vmatprep.subr.mxu0 0.0
        %1073 = vmatpush1.msra.mxu0 0.0
        %1074 = vmatprep.subr.mxu0 0.0
        %1075 = vmatpush1.msra.mxu0 0.0
        %1076 = vmatprep.subr.mxu0 0.0
        %1077 = vmatpush1.msra.mxu0 0.0
        %1078 = vmatprep.subr.mxu0 0.0
        %1079 = vmatpush1.msra.mxu0 0.0
        %1080 = vmatprep.subr.mxu0 0.0
        %1081 = vmatpush1.msra.mxu0 0.0
        %1082 = vmatprep.subr.mxu0 0.0
        %1083 = vmatpush1.msra.mxu0 0.0
        %1084 = vmatprep.subr.mxu0 0.0
        %1085 = vmatpush1.msra.mxu0 0.0
        %1086 = vmatprep.subr.mxu0 0.0
        %1087 = vmatpush1.msra.mxu0 0.0
        %1088 = vmatprep.subr.mxu0 0.0
        %1089 = vmatpush1.msra.mxu0 0.0
        %1090 = vmatprep.subr.mxu0 0.0
        %1091 = vmatpush1.msra.mxu0 0.0
        %1092 = vmatprep.subr.mxu0 0.0
        %1093 = vmatpush1.msra.mxu0 0.0
        %1094 = vmatprep.subr.mxu0 0.0
        %1095 = vmatpush1.msra.mxu0 0.0
        %1096 = vmatprep.subr.mxu0 0.0
        %1097 = vmatpush1.msra.mxu0 0.0
        %1098 = vmatprep.subr.mxu0 0.0
        %1099 = vmatpush1.msra.mxu0 0.0
        %1100 = vmatprep.subr.mxu0 0.0
        %1101 = vmatpush1.msra.mxu0 %v1065
        %1102 = vmatprep.subr.mxu0 0.0
        %1103 = vmatpush2.msra.mxu0 0.0
        %1104 = vmatprep.subr.mxu0 0.0
        %1105 = vmatpush2.msra.mxu0 0.0
        %1106 = vmatprep.subr.mxu0 0.0
        %1107 = vmatpush2.msra.mxu0 0.0
        %1108 = vmatprep.subr.mxu0 0.0
        %1109 = vmatpush2.msra.mxu0 0.0
        %1110 = vmatprep.subr.mxu0 0.0
        %1111 = vmatpush2.msra.mxu0 0.0
        %1112 = vmatprep.subr.mxu0 0.0
        %1113 = vmatpush2.msra.mxu0 0.0
        %1114 = vmatprep.subr.mxu0 0.0
        %1115 = vmatpush2.msra.mxu0 0.0
        %1116 = vmatprep.subr.mxu0 0.0
        %1117 = vmatpush2.msra.mxu0 0.0
        %1118 = vmatprep.subr.mxu0 0.0
        %1119 = vmatpush2.msra.mxu0 0.0
        %1120 = vmatprep.subr.mxu0 0.0
        %1121 = vmatpush2.msra.mxu0 0.0
        %1122 = vmatprep.subr.mxu0 0.0
        %1123 = vmatpush2.msra.mxu0 0.0
        %1124 = vmatprep.subr.mxu0 0.0
        %1125 = vmatpush2.msra.mxu0 0.0
        %1126 = vmatprep.subr.mxu0 0.0
        %1127 = vmatpush2.msra.mxu0 0.0
        %1128 = vmatprep.subr.mxu0 0.0
        %1129 = vmatpush2.msra.mxu0 0.0
        %1130 = vmatprep.subr.mxu0 0.0
        %1131 = vmatpush2.msra.mxu0 0.0
        %1132 = vmatprep.subr.mxu0 0.0
        %1133 = vmatpush2.msra.mxu0 0.0
        %1134 = vmatprep.mubr.f32.mxu0 0.0
        %1135 = vmatmul.mubr.f32.gmra.mxu0 %v1068
        %v1136 = vpop.f32.mrf.mxu0
        %v1137 = vadd.f32 0.0, %v1136
        %v1138 = vpop.f32.mrf.mxu0
        %1139 = vdwg.mxu0
        %v1140 = vmul.f32 %v1137, %v1062
        %1141 = vrot.lane.b32.xlu0 %v811, 112
        %v1142 = vpop.permute.xlu0 %1141
        %1143 = vrot.lane.b32.xlu0 %v812, 112
        %v1144 = vpop.permute.xlu0 %1143
        %v1145 = vsel %vm814, %v1142, 0
        %v1147 = vsel %vm814, %v1144, 0
        %1149 = vmatprep.subr.mxu0 0.0
        %1150 = vmatpush1.xpose.msra.mxu0 0.0
        %1151 = vmatprep.subr.mxu0 0.0
        %1152 = vmatpush1.xpose.msra.mxu0 0.0
        %1153 = vmatprep.subr.mxu0 0.0
        %1154 = vmatpush1.xpose.msra.mxu0 0.0
        %1155 = vmatprep.subr.mxu0 0.0
        %1156 = vmatpush1.xpose.msra.mxu0 0.0
        %1157 = vmatprep.subr.mxu0 0.0
        %1158 = vmatpush1.xpose.msra.mxu0 0.0
        %1159 = vmatprep.subr.mxu0 0.0
        %1160 = vmatpush1.xpose.msra.mxu0 0.0
        %1161 = vmatprep.subr.mxu0 0.0
        %1162 = vmatpush1.xpose.msra.mxu0 0.0
        %1163 = vmatprep.subr.mxu0 0.0
        %1164 = vmatpush1.xpose.msra.mxu0 0.0
        %1165 = vmatprep.subr.mxu0 0.0
        %1166 = vmatpush1.xpose.msra.mxu0 0.0
        %1167 = vmatprep.subr.mxu0 0.0
        %1168 = vmatpush1.xpose.msra.mxu0 0.0
        %1169 = vmatprep.subr.mxu0 0.0
        %1170 = vmatpush1.xpose.msra.mxu0 0.0
        %1171 = vmatprep.subr.mxu0 0.0
        %1172 = vmatpush1.xpose.msra.mxu0 0.0
        %1173 = vmatprep.subr.mxu0 0.0
        %1174 = vmatpush1.xpose.msra.mxu0 0.0
        %1175 = vmatprep.subr.mxu0 0.0
        %1176 = vmatpush1.xpose.msra.mxu0 0.0
        %1177 = vmatprep.subr.mxu0 0.0
        %1178 = vmatpush1.xpose.msra.mxu0 0.0
        %1179 = vmatprep.subr.mxu0 0.0
        %1180 = vmatpush1.xpose.msra.mxu0 %v1147
        %1181 = vmatprep.subr.mxu0 0.0
        %1182 = vmatpush2.xpose.msra.mxu0 0.0
        %1183 = vmatprep.subr.mxu0 0.0
        %1184 = vmatpush2.xpose.msra.mxu0 0.0
        %1185 = vmatprep.subr.mxu0 0.0
        %1186 = vmatpush2.xpose.msra.mxu0 0.0
        %1187 = vmatprep.subr.mxu0 0.0
        %1188 = vmatpush2.xpose.msra.mxu0 0.0
        %1189 = vmatprep.subr.mxu0 0.0
        %1190 = vmatpush2.xpose.msra.mxu0 0.0
        %1191 = vmatprep.subr.mxu0 0.0
        %1192 = vmatpush2.xpose.msra.mxu0 0.0
        %1193 = vmatprep.subr.mxu0 0.0
        %1194 = vmatpush2.xpose.msra.mxu0 0.0
        %1195 = vmatprep.subr.mxu0 0.0
        %1196 = vmatpush2.xpose.msra.mxu0 0.0
        %1197 = vmatprep.subr.mxu0 0.0
        %1198 = vmatpush2.xpose.msra.mxu0 0.0
        %1199 = vmatprep.subr.mxu0 0.0
        %1200 = vmatpush2.xpose.msra.mxu0 0.0
        %1201 = vmatprep.subr.mxu0 0.0
        %1202 = vmatpush2.xpose.msra.mxu0 0.0
        %1203 = vmatprep.subr.mxu0 0.0
        %1204 = vmatpush2.xpose.msra.mxu0 0.0
        %1205 = vmatprep.subr.mxu0 0.0
        %1206 = vmatpush2.xpose.msra.mxu0 0.0
        %1207 = vmatprep.subr.mxu0 0.0
        %1208 = vmatpush2.xpose.msra.mxu0 0.0
        %1209 = vmatprep.subr.mxu0 0.0
        %1210 = vmatpush2.xpose.msra.mxu0 0.0
        %1211 = vmatprep.subr.mxu0 0.0
        %1212 = vmatpush2.xpose.msra.mxu0 0.0
        %1213 = vmatprep.mubr.f32.mxu0 0.0
        %1214 = vmatmul.mubr.f32.gmra.mxu0 %v1145
        %v1215 = vpop.f32.mrf.mxu0
        %v1216 = vadd.f32 0.0, %v1215
        %v1217 = vpop.f32.mrf.mxu0
        %1218 = vdwg.mxu0
        %v1219 = vsel %vm814, %v1216, -inf
        %1220 = vmax.xlane.f32.xlu0 %v1219
        %v1221 = vpop.xlane.xlu0 %1220
        %v1222 = vsub.f32 %v1216, %v1221
        %v1223 = vmul.f32 %v1222, 1.442695
        %v1224 = vpow.pop %v1223
        %v1225 = vsel %vm814, %v1224, 0.0
        %1226 = vadd.xlane.f32.xlu0 %v1225
        %v1227 = vpop.xlane.xlu0 %1226
        %v1228 = vrcp.pop %v1227
        %1229 = vrot.lane.b32.xlu0 %v813, 112
        %v1230 = vpop.permute.xlu0 %1229
        %v1233 = vsel %vm814, %v1224, 0
        %1235 = vmatprep.subr.mxu0 0.0
        %1236 = vmatpush1.msra.mxu0 0.0
        %1237 = vmatprep.subr.mxu0 0.0
        %1238 = vmatpush1.msra.mxu0 0.0
        %1239 = vmatprep.subr.mxu0 0.0
        %1240 = vmatpush1.msra.mxu0 0.0
        %1241 = vmatprep.subr.mxu0 0.0
        %1242 = vmatpush1.msra.mxu0 0.0
        %1243 = vmatprep.subr.mxu0 0.0
        %1244 = vmatpush1.msra.mxu0 0.0
        %1245 = vmatprep.subr.mxu0 0.0
        %1246 = vmatpush1.msra.mxu0 0.0
        %1247 = vmatprep.subr.mxu0 0.0
        %1248 = vmatpush1.msra.mxu0 0.0
        %1249 = vmatprep.subr.mxu0 0.0
        %1250 = vmatpush1.msra.mxu0 0.0
        %1251 = vmatprep.subr.mxu0 0.0
        %1252 = vmatpush1.msra.mxu0 0.0
        %1253 = vmatprep.subr.mxu0 0.0
        %1254 = vmatpush1.msra.mxu0 0.0
        %1255 = vmatprep.subr.mxu0 0.0
        %1256 = vmatpush1.msra.mxu0 0.0
        %1257 = vmatprep.subr.mxu0 0.0
        %1258 = vmatpush1.msra.mxu0 0.0
        %1259 = vmatprep.subr.mxu0 0.0
        %1260 = vmatpush1.msra.mxu0 0.0
        %1261 = vmatprep.subr.mxu0 0.0
        %1262 = vmatpush1.msra.mxu0 0.0
        %1263 = vmatprep.subr.mxu0 0.0
        %1264 = vmatpush1.msra.mxu0 0.0
        %1265 = vmatprep.subr.mxu0 0.0
        %1266 = vmatpush1.msra.mxu0 %v1230
        %1267 = vmatprep.subr.mxu0 0.0
        %1268 = vmatpush2.msra.mxu0 0.0
        %1269 = vmatprep.subr.mxu0 0.0
        %1270 = vmatpush2.msra.mxu0 0.0
        %1271 = vmatprep.subr.mxu0 0.0
        %1272 = vmatpush2.msra.mxu0 0.0
        %1273 = vmatprep.subr.mxu0 0.0
        %1274 = vmatpush2.msra.mxu0 0.0
        %1275 = vmatprep.subr.mxu0 0.0
        %1276 = vmatpush2.msra.mxu0 0.0
        %1277 = vmatprep.subr.mxu0 0.0
        %1278 = vmatpush2.msra.mxu0 0.0
        %1279 = vmatprep.subr.mxu0 0.0
        %1280 = vmatpush2.msra.mxu0 0.0
        %1281 = vmatprep.subr.mxu0 0.0
        %1282 = vmatpush2.msra.mxu0 0.0
        %1283 = vmatprep.subr.mxu0 0.0
        %1284 = vmatpush2.msra.mxu0 0.0
        %1285 = vmatprep.subr.mxu0 0.0
        %1286 = vmatpush2.msra.mxu0 0.0
        %1287 = vmatprep.subr.mxu0 0.0
        %1288 = vmatpush2.msra.mxu0 0.0
        %1289 = vmatprep.subr.mxu0 0.0
        %1290 = vmatpush2.msra.mxu0 0.0
        %1291 = vmatprep.subr.mxu0 0.0
        %1292 = vmatpush2.msra.mxu0 0.0
        %1293 = vmatprep.subr.mxu0 0.0
        %1294 = vmatpush2.msra.mxu0 0.0
        %1295 = vmatprep.subr.mxu0 0.0
        %1296 = vmatpush2.msra.mxu0 0.0
        %1297 = vmatprep.subr.mxu0 0.0
        %1298 = vmatpush2.msra.mxu0 0.0
        %1299 = vmatprep.mubr.f32.mxu0 0.0
        %1300 = vmatmul.mubr.f32.gmra.mxu0 %v1233
        %v1301 = vpop.f32.mrf.mxu0
        %v1302 = vadd.f32 0.0, %v1301
        %v1303 = vpop.f32.mrf.mxu0
        %1304 = vdwg.mxu0
        %v1305 = vmul.f32 %v1302, %v1228
        %1306 = vrot.lane.b32.xlu0 %v811, 104
        %v1307 = vpop.permute.xlu0 %1306
        %1308 = vrot.lane.b32.xlu0 %v812, 104
        %v1309 = vpop.permute.xlu0 %1308
        %v1310 = vsel %vm814, %v1307, 0
        %v1312 = vsel %vm814, %v1309, 0
        %1314 = vmatprep.subr.mxu0 0.0
        %1315 = vmatpush1.xpose.msra.mxu0 0.0
        %1316 = vmatprep.subr.mxu0 0.0
        %1317 = vmatpush1.xpose.msra.mxu0 0.0
        %1318 = vmatprep.subr.mxu0 0.0
        %1319 = vmatpush1.xpose.msra.mxu0 0.0
        %1320 = vmatprep.subr.mxu0 0.0
        %1321 = vmatpush1.xpose.msra.mxu0 0.0
        %1322 = vmatprep.subr.mxu0 0.0
        %1323 = vmatpush1.xpose.msra.mxu0 0.0
        %1324 = vmatprep.subr.mxu0 0.0
        %1325 = vmatpush1.xpose.msra.mxu0 0.0
        %1326 = vmatprep.subr.mxu0 0.0
        %1327 = vmatpush1.xpose.msra.mxu0 0.0
        %1328 = vmatprep.subr.mxu0 0.0
        %1329 = vmatpush1.xpose.msra.mxu0 0.0
        %1330 = vmatprep.subr.mxu0 0.0
        %1331 = vmatpush1.xpose.msra.mxu0 0.0
        %1332 = vmatprep.subr.mxu0 0.0
        %1333 = vmatpush1.xpose.msra.mxu0 0.0
        %1334 = vmatprep.subr.mxu0 0.0
        %1335 = vmatpush1.xpose.msra.mxu0 0.0
        %1336 = vmatprep.subr.mxu0 0.0
        %1337 = vmatpush1.xpose.msra.mxu0 0.0
        %1338 = vmatprep.subr.mxu0 0.0
        %1339 = vmatpush1.xpose.msra.mxu0 0.0
        %1340 = vmatprep.subr.mxu0 0.0
        %1341 = vmatpush1.xpose.msra.mxu0 0.0
        %1342 = vmatprep.subr.mxu0 0.0
        %1343 = vmatpush1.xpose.msra.mxu0 0.0
        %1344 = vmatprep.subr.mxu0 0.0
        %1345 = vmatpush1.xpose.msra.mxu0 %v1312
        %1346 = vmatprep.subr.mxu0 0.0
        %1347 = vmatpush2.xpose.msra.mxu0 0.0
        %1348 = vmatprep.subr.mxu0 0.0
        %1349 = vmatpush2.xpose.msra.mxu0 0.0
        %1350 = vmatprep.subr.mxu0 0.0
        %1351 = vmatpush2.xpose.msra.mxu0 0.0
        %1352 = vmatprep.subr.mxu0 0.0
        %1353 = vmatpush2.xpose.msra.mxu0 0.0
        %1354 = vmatprep.subr.mxu0 0.0
        %1355 = vmatpush2.xpose.msra.mxu0 0.0
        %1356 = vmatprep.subr.mxu0 0.0
        %1357 = vmatpush2.xpose.msra.mxu0 0.0
        %1358 = vmatprep.subr.mxu0 0.0
        %1359 = vmatpush2.xpose.msra.mxu0 0.0
        %1360 = vmatprep.subr.mxu0 0.0
        %1361 = vmatpush2.xpose.msra.mxu0 0.0
        %1362 = vmatprep.subr.mxu0 0.0
        %1363 = vmatpush2.xpose.msra.mxu0 0.0
        %1364 = vmatprep.subr.mxu0 0.0
        %1365 = vmatpush2.xpose.msra.mxu0 0.0
        %1366 = vmatprep.subr.mxu0 0.0
        %1367 = vmatpush2.xpose.msra.mxu0 0.0
        %1368 = vmatprep.subr.mxu0 0.0
        %1369 = vmatpush2.xpose.msra.mxu0 0.0
        %1370 = vmatprep.subr.mxu0 0.0
        %1371 = vmatpush2.xpose.msra.mxu0 0.0
        %1372 = vmatprep.subr.mxu0 0.0
        %1373 = vmatpush2.xpose.msra.mxu0 0.0
        %1374 = vmatprep.subr.mxu0 0.0
        %1375 = vmatpush2.xpose.msra.mxu0 0.0
        %1376 = vmatprep.subr.mxu0 0.0
        %1377 = vmatpush2.xpose.msra.mxu0 0.0
        %1378 = vmatprep.mubr.f32.mxu0 0.0
        %1379 = vmatmul.mubr.f32.gmra.mxu0 %v1310
        %v1380 = vpop.f32.mrf.mxu0
        %v1381 = vadd.f32 0.0, %v1380
        %v1382 = vpop.f32.mrf.mxu0
        %1383 = vdwg.mxu0
        %v1384 = vsel %vm814, %v1381, -inf
        %1385 = vmax.xlane.f32.xlu0 %v1384
        %v1386 = vpop.xlane.xlu0 %1385
        %v1387 = vsub.f32 %v1381, %v1386
        %v1388 = vmul.f32 %v1387, 1.442695
        %v1389 = vpow.pop %v1388
        %v1390 = vsel %vm814, %v1389, 0.0
        %1391 = vadd.xlane.f32.xlu0 %v1390
        %v1392 = vpop.xlane.xlu0 %1391
        %v1393 = vrcp.pop %v1392
        %1394 = vrot.lane.b32.xlu0 %v813, 104
        %v1395 = vpop.permute.xlu0 %1394
        %v1398 = vsel %vm814, %v1389, 0
        %1400 = vmatprep.subr.mxu0 0.0
        %1401 = vmatpush1.msra.mxu0 0.0
        %1402 = vmatprep.subr.mxu0 0.0
        %1403 = vmatpush1.msra.mxu0 0.0
        %1404 = vmatprep.subr.mxu0 0.0
        %1405 = vmatpush1.msra.mxu0 0.0
        %1406 = vmatprep.subr.mxu0 0.0
        %1407 = vmatpush1.msra.mxu0 0.0
        %1408 = vmatprep.subr.mxu0 0.0
        %1409 = vmatpush1.msra.mxu0 0.0
        %1410 = vmatprep.subr.mxu0 0.0
        %1411 = vmatpush1.msra.mxu0 0.0
        %1412 = vmatprep.subr.mxu0 0.0
        %1413 = vmatpush1.msra.mxu0 0.0
        %1414 = vmatprep.subr.mxu0 0.0
        %1415 = vmatpush1.msra.mxu0 0.0
        %1416 = vmatprep.subr.mxu0 0.0
        %1417 = vmatpush1.msra.mxu0 0.0
        %1418 = vmatprep.subr.mxu0 0.0
        %1419 = vmatpush1.msra.mxu0 0.0
        %1420 = vmatprep.subr.mxu0 0.0
        %1421 = vmatpush1.msra.mxu0 0.0
        %1422 = vmatprep.subr.mxu0 0.0
        %1423 = vmatpush1.msra.mxu0 0.0
        %1424 = vmatprep.subr.mxu0 0.0
        %1425 = vmatpush1.msra.mxu0 0.0
        %1426 = vmatprep.subr.mxu0 0.0
        %1427 = vmatpush1.msra.mxu0 0.0
        %1428 = vmatprep.subr.mxu0 0.0
        %1429 = vmatpush1.msra.mxu0 0.0
        %1430 = vmatprep.subr.mxu0 0.0
        %1431 = vmatpush1.msra.mxu0 %v1395
        %1432 = vmatprep.subr.mxu0 0.0
        %1433 = vmatpush2.msra.mxu0 0.0
        %1434 = vmatprep.subr.mxu0 0.0
        %1435 = vmatpush2.msra.mxu0 0.0
        %1436 = vmatprep.subr.mxu0 0.0
        %1437 = vmatpush2.msra.mxu0 0.0
        %1438 = vmatprep.subr.mxu0 0.0
        %1439 = vmatpush2.msra.mxu0 0.0
        %1440 = vmatprep.subr.mxu0 0.0
        %1441 = vmatpush2.msra.mxu0 0.0
        %1442 = vmatprep.subr.mxu0 0.0
        %1443 = vmatpush2.msra.mxu0 0.0
        %1444 = vmatprep.subr.mxu0 0.0
        %1445 = vmatpush2.msra.mxu0 0.0
        %1446 = vmatprep.subr.mxu0 0.0
        %1447 = vmatpush2.msra.mxu0 0.0
        %1448 = vmatprep.subr.mxu0 0.0
        %1449 = vmatpush2.msra.mxu0 0.0
        %1450 = vmatprep.subr.mxu0 0.0
        %1451 = vmatpush2.msra.mxu0 0.0
        %1452 = vmatprep.subr.mxu0 0.0
        %1453 = vmatpush2.msra.mxu0 0.0
        %1454 = vmatprep.subr.mxu0 0.0
        %1455 = vmatpush2.msra.mxu0 0.0
        %1456 = vmatprep.subr.mxu0 0.0
        %1457 = vmatpush2.msra.mxu0 0.0
        %1458 = vmatprep.subr.mxu0 0.0
        %1459 = vmatpush2.msra.mxu0 0.0
        %1460 = vmatprep.subr.mxu0 0.0
        %1461 = vmatpush2.msra.mxu0 0.0
        %1462 = vmatprep.subr.mxu0 0.0
        %1463 = vmatpush2.msra.mxu0 0.0
        %1464 = vmatprep.mubr.f32.mxu0 0.0
        %1465 = vmatmul.mubr.f32.gmra.mxu0 %v1398
        %v1466 = vpop.f32.mrf.mxu0
        %v1467 = vadd.f32 0.0, %v1466
        %v1468 = vpop.f32.mrf.mxu0
        %1469 = vdwg.mxu0
        %v1470 = vmul.f32 %v1467, %v1393
        %1472 = vrot.lane.b32.xlu0 %v1140, 8
        %v1473 = vpop.permute.xlu0 %1472
        %1476 = vrot.lane.b32.xlu0 %v1305, 16
        %v1477 = vpop.permute.xlu0 %1476
        %1480 = vrot.lane.b32.xlu0 %v1470, 24
        %v1481 = vpop.permute.xlu0 %1480
        %v1483 = vsel %vm814, %v974, %v1473
        %vm1484 = vcmask 130048
        %v1485 = vsel %vm1484, %v1483, %v1477
        %vm1486 = vcmask 195584
        %v1487 = vsel %vm1486, %v1485, %v1481
        %v1488 = vld [vmem:[#allocation15] sm:$0xff]
        %v1489 = vld [vmem:[#allocation15 + $0x8] sm:$0xff]
        %v1490 = vld [vmem:[#allocation15 + $0x10] sm:$0xff]
        %v1491 = vld [vmem:[#allocation15 + $0x18] sm:$0xff]
        %v1492 = vld [vmem:[%s10] sm:$0x1]
        %v1494 = vlaneseq
        %v1495 = vshrl.u32 %v1494, 7
        %v1496 = vsub.s32 0, %v1495
        %v1497 = vrot.slane %v1492, %v1496
        %v1500 = vsel %vm737, %v1487, 0
        %1502 = vmatprep.subr.mxu0 0.0
        %1503 = vmatpush1.msra.mxu0 0.0
        %1504 = vmatprep.subr.mxu0 0.0
        %1505 = vmatpush1.msra.mxu0 0.0
        %1506 = vmatprep.subr.mxu0 0.0
        %1507 = vmatpush1.msra.mxu0 0.0
        %1508 = vmatprep.subr.mxu0 0.0
        %1509 = vmatpush1.msra.mxu0 0.0
        %1510 = vmatprep.subr.mxu0 0.0
        %1511 = vmatpush1.msra.mxu0 0.0
        %1512 = vmatprep.subr.mxu0 0.0
        %1513 = vmatpush1.msra.mxu0 0.0
        %1514 = vmatprep.subr.mxu0 0.0
        %1515 = vmatpush1.msra.mxu0 0.0
        %1516 = vmatprep.subr.mxu0 0.0
        %1517 = vmatpush1.msra.mxu0 0.0
        %1518 = vmatprep.subr.mxu0 0.0
        %1519 = vmatpush1.msra.mxu0 0.0
        %1520 = vmatprep.subr.mxu0 0.0
        %1521 = vmatpush1.msra.mxu0 0.0
        %1522 = vmatprep.subr.mxu0 0.0
        %1523 = vmatpush1.msra.mxu0 0.0
        %1524 = vmatprep.subr.mxu0 0.0
        %1525 = vmatpush1.msra.mxu0 0.0
        %1526 = vmatprep.subr.mxu0 0.0
        %1527 = vmatpush1.msra.mxu0 %v1491
        %1528 = vmatprep.subr.mxu0 0.0
        %1529 = vmatpush1.msra.mxu0 %v1490
        %1530 = vmatprep.subr.mxu0 0.0
        %1531 = vmatpush1.msra.mxu0 %v1489
        %1532 = vmatprep.subr.mxu0 0.0
        %1533 = vmatpush1.msra.mxu0 %v1488
        %1534 = vmatprep.subr.mxu0 0.0
        %1535 = vmatpush2.msra.mxu0 0.0
        %1536 = vmatprep.subr.mxu0 0.0
        %1537 = vmatpush2.msra.mxu0 0.0
        %1538 = vmatprep.subr.mxu0 0.0
        %1539 = vmatpush2.msra.mxu0 0.0
        %1540 = vmatprep.subr.mxu0 0.0
        %1541 = vmatpush2.msra.mxu0 0.0
        %1542 = vmatprep.subr.mxu0 0.0
        %1543 = vmatpush2.msra.mxu0 0.0
        %1544 = vmatprep.subr.mxu0 0.0
        %1545 = vmatpush2.msra.mxu0 0.0
        %1546 = vmatprep.subr.mxu0 0.0
        %1547 = vmatpush2.msra.mxu0 0.0
        %1548 = vmatprep.subr.mxu0 0.0
        %1549 = vmatpush2.msra.mxu0 0.0
        %1550 = vmatprep.subr.mxu0 0.0
        %1551 = vmatpush2.msra.mxu0 0.0
        %1552 = vmatprep.subr.mxu0 0.0
        %1553 = vmatpush2.msra.mxu0 0.0
        %1554 = vmatprep.subr.mxu0 0.0
        %1555 = vmatpush2.msra.mxu0 0.0
        %1556 = vmatprep.subr.mxu0 0.0
        %1557 = vmatpush2.msra.mxu0 0.0
        %1558 = vmatprep.subr.mxu0 0.0
        %1559 = vmatpush2.msra.mxu0 0.0
        %1560 = vmatprep.subr.mxu0 0.0
        %1561 = vmatpush2.msra.mxu0 0.0
        %1562 = vmatprep.subr.mxu0 0.0
        %1563 = vmatpush2.msra.mxu0 0.0
        %1564 = vmatprep.subr.mxu0 0.0
        %1565 = vmatpush2.msra.mxu0 0.0
        %1566 = vmatprep.mubr.f32.mxu0 0.0
        %1567 = vmatmul.mubr.f32.gmra.mxu0 %v1500
        %v1568 = vpop.f32.mrf.mxu0
        %v1569 = vadd.f32 %v1497, %v1568
        %v1570 = vpop.f32.mrf.mxu0
        %1571 = vdwg.mxu0
        %1572 = vst.msk [vmem:[%s547] sm:$0xff] %vm737, %v1569
        %s1573 = sand.u32 %s303, 1
        %s1574 = scalar_lea.sflag [#allocation6], %s1573
        %s1575 = sand.u32 %s303, 1
        %s1576 = smul.addr %s1575, 8
        %s1577 = scalar_lea.vmem [#allocation16], %s1576
        // Predicated region
        $region97: #{tpu_custom_call.1} parent=63 // pred_check
          %p1578 = pneg %p313
        $region98: #{tpu_custom_call.1} parent=63 // pred_check_branch
          %1580 = sbr.rel (%p1578) target = $region100
        $region99: #{tpu_custom_call.1} parent=63 // pred_region
          %s1582 = ssub.s32 128, 128
          %1583 = vsyncadd %s1574, %s1582
          %s1584 = sadd.s32 %s38, %s37
          %s1585 = smul.addr %s1584, 128
          %s1586 = scalar_lea.hbm %s11, %s1585
          %s1588 = sshll.u32 %s1577, 4
          %s1589 = int_to_ptr.vmem [resolvable:$true] %s1588
          %1591 = dma.vmem_to_hbm [thread:$0]  %s1589, 128, %s1586, %s1574
        $region100: #{tpu_custom_call.1} parent=63 // pred_fallthru
          _
      $region64: #{tpu_custom_call.1} parent=5 // pred_fallthru
        _
      %p1592 = scmp.le.s32.totalorder 2, %s28
      // Predicated region
      $region101: #{tpu_custom_call.1} parent=5 // pred_check
        %p1593 = pneg %p1592
      $region102: #{tpu_custom_call.1} parent=5 // pred_check_branch
        %1595 = sbr.rel (%p1593) target = $region104
      $region103: #{tpu_custom_call.1} parent=5 // pred_region
        %s1596 = ssub.s32 %s28, 2
        // Predicated region
        $region105: #{tpu_custom_call.1} parent=103 // pred_check
          %p1597 = pneg %p319
        $region106: #{tpu_custom_call.1} parent=103 // pred_check_branch
          %1599 = sbr.rel (%p1597) target = $region108
        $region107: #{tpu_custom_call.1} parent=103 // pred_region
          %s1600 = sand.u32 %s304, 1
          %s1601 = scalar_lea.sflag [#allocation6], %s1600
          %s1602 = sand.u32 %s304, 1
          %s1603 = smul.addr %s1602, 8
          %s1604 = scalar_lea.vmem [#allocation16], %s1603
          %1605 = dma.done %s1601, 128
        $region108: #{tpu_custom_call.1} parent=103 // pred_fallthru
          _
      $region104: #{tpu_custom_call.1} parent=5 // pred_fallthru
        _
    $region6: #{tpu_custom_call.1} parent=1 // loop_footer
      %s32 = sadd.s32 1, %s28
    $region7: #{tpu_custom_call.1} parent=1 // loop_footer_branch
      %27 = sbr.rel target = $region3
    $region8: #{tpu_custom_call.1} parent=1 // loop_exit
      _
    %1606 = vsyncpa [#allocation5], 1
    %s1607 = scalar_lea.sflag [#allocation5], 1
    %1608 = vsyncpa %s1607, 1
    %1609 = vsyncpa [#allocation8], 1
    %s1610 = scalar_lea.sflag [#allocation8], 1
    %1611 = vsyncpa %s1610, 1
    %1612 = vsyncpa [#allocation11], 1
    %1613 = vsyncpa [#allocation14], 1
    %1614 = vsyncpa [#allocation6], 1
    %s1615 = scalar_lea.sflag [#allocation6], 1
    %1616 = vsyncpa %s1615, 1

</llo_original>
